<compile_context>
chip_gen: v7x
topology: tpu7x:2x2x1
jax: 0.10.0
libtpu: 0.0.40
codegen_flags: <defaults>
</compile_context>

<pallas_src>
import math
import functools

import jax
import jax.numpy as jnp
from jax.experimental import pallas as pl
from jax.experimental.pallas import tpu as pltpu


def mla_kernel(latent_ref, x_ref,
               wq_ref, bq_ref,          # (C, H*D) bf16 (scale folded), (1, H*D) f32
               wc_ref, bc_ref,          # (In, R)  bf16,                (1, R)   f32
               wkv_ref, bkv_ref,        # (R, 2*H*D) bf16 (K | V),      (1, 2*H*D) f32
               wo_ref, bo_ref,          # (H*D, C) bf16,                (1, C)   f32
               out_ref, attn_ref, *,
               num_heads, head_dim):
    f32 = jnp.float32
    bf16 = jnp.bfloat16
    H, D = num_heads, head_dim
    HD = H * D

    lat = latent_ref[0]                                   # (L, C) bf16
    xs = x_ref[0]                                         # (S, In) bf16

    # Shared low-rank compression: one dense 2-D MXU matmul.
    comp = jnp.dot(xs, wc_ref[...],
                   preferred_element_type=f32) + bc_ref[...]          # (S, R) f32

    # Fused Q projection over all heads (1/sqrt(head_dim) folded into wq/bq).
    q2 = jnp.dot(lat, wq_ref[...],
                 preferred_element_type=f32) + bq_ref[...]            # (L, H*D) f32

    # Fused K|V decompression: one (S, R) @ (R, 2*H*D) matmul.
    kv2 = jnp.dot(comp.astype(bf16), wkv_ref[...],
                  preferred_element_type=f32) + bkv_ref[...]          # (S, 2*H*D) f32
    k2 = kv2[:, :HD]                                                  # (S, H*D)
    v2 = kv2[:, HD:]                                                  # (S, H*D)

    # Head-major views via static slices (no transposes / minor reshapes).
    q_b, k_b, v_b = q2.astype(bf16), k2.astype(bf16), v2.astype(bf16)
    q_h = jnp.concatenate([q_b[None, :, h * D:(h + 1) * D] for h in range(H)],
                          axis=0)                                     # (H, L, D)
    k_h = jnp.concatenate([k_b[None, :, h * D:(h + 1) * D] for h in range(H)],
                          axis=0)                                     # (H, S, D)
    v_h = jnp.concatenate([v_b[None, :, h * D:(h + 1) * D] for h in range(H)],
                          axis=0)                                     # (H, S, D)

    # Scores + softmax (all softmax math in f32).
    scores = jnp.einsum('hld,hsd->hls', q_h, k_h,
                        preferred_element_type=f32)                   # (H, L, S)
    m = jnp.max(scores, axis=-1, keepdims=True)
    e = jnp.exp(scores - m)
    denom = jnp.sum(e, axis=-1, keepdims=True)
    attn = e * pl.reciprocal(denom, approx=True)                      # softmax over S
    # Dropout p=0.0 -> identity.

    # Single full-block store of this batch element's attention weights.
    attn_ref[0] = attn.astype(attn_ref.dtype)                         # (H, L, S)

    # Context per head, flatten heads back onto lanes, fused output projection.
    ctx = jnp.einsum('hls,hsd->hld', attn.astype(bf16), v_h,
                     preferred_element_type=f32)                      # (H, L, D)
    ctx_b = ctx.astype(bf16)
    ctx_flat = jnp.concatenate([ctx_b[h] for h in range(H)], axis=-1)  # (L, H*D)
    out = jnp.dot(ctx_flat, wo_ref[...],
                  preferred_element_type=f32) + bo_ref[...]           # (L, C)
    out_ref[0] = out.astype(out_ref.dtype)


def multihead_latent_attention(latent, x, params, *, num_heads):
    B, L, latent_dim = latent.shape
    _, S, input_dim = x.shape
    head_dim = latent_dim // num_heads
    latent_rank = params["wc"].shape[1]
    H, D = num_heads, head_dim
    HD = H * D
    scale = 1.0 / math.sqrt(head_dim)
    bf16 = jnp.bfloat16

    # ---- wrapper-side packing (plain XLA, outside the kernel) ----
    # Fold the softmax scale into the query projection; cast weights to bf16
    # (MXU-native on all generations); biases stay f32 (post-accumulation add).
    wq = (params["wq"] * scale).astype(bf16)                          # (C, H*D)
    bq = params["bq"] * scale                                         # (1, H*D)
    wc = params["wc"].astype(bf16)                                    # (In, R)
    bc = params["bc"]                                                 # (1, R)
    # Fused K|V decompression: K occupies cols [0, H*D), V cols [H*D, 2*H*D).
    wkv = jnp.concatenate([params["wk"], params["wv"]], axis=-1).astype(bf16)
    bkv = jnp.concatenate([params["bk"], params["bv"]], axis=-1)      # (1, 2*H*D)
    wo = params["wo"].astype(bf16)                                    # (H*D, C)
    bo = params["bo"]                                                 # (1, C)

    lat_b = latent.astype(bf16)
    x_b = x.astype(bf16)

    kernel = functools.partial(mla_kernel, num_heads=H, head_dim=D)

    def batch_spec(shape):  # blocks indexed along the (leading) batch grid axis
        n = len(shape)
        return pl.BlockSpec(shape, lambda b, n=n: (b,) + (0,) * (n - 1))

    def const_spec(shape):  # weights: same block every step -> DMA'd once
        n = len(shape)
        return pl.BlockSpec(shape, lambda b, n=n: (0,) * n)

    out_shapes = (
        jax.ShapeDtypeStruct((B, L, latent_dim), jnp.float32),
        jax.ShapeDtypeStruct((B, H, L, S), jnp.float32),
    )

    return pl.pallas_call(
        kernel,
        out_shape=out_shapes,
        grid=(B,),
        in_specs=[
            batch_spec((1, L, latent_dim)),        # latent
            batch_spec((1, S, input_dim)),         # x
            const_spec((latent_dim, HD)),          # wq (scaled, bf16)
            const_spec((1, HD)),                   # bq (scaled)
            const_spec((input_dim, latent_rank)),  # wc
            const_spec((1, latent_rank)),          # bc
            const_spec((latent_rank, 2 * HD)),     # wkv (fused K|V)
            const_spec((1, 2 * HD)),               # bkv
            const_spec((HD, latent_dim)),          # wo
            const_spec((1, latent_dim)),           # bo
        ],
        out_specs=[
            batch_spec((1, L, latent_dim)),
            batch_spec((1, H, L, S)),
        ],
        compiler_params=pltpu.CompilerParams(
            dimension_semantics=("parallel",),
            vmem_limit_bytes=32 * 1024 * 1024),
    )(lat_b, x_b, wq, bq, wc, bc, wkv, bkv, wo, bo)


def _init_linear(key, in_dim, out_dim):
    """Deterministic init mimicking nn.Linear (uniform +-1/sqrt(in_dim)).
    Weight is stored pre-transposed as (in_dim, out_dim)."""
    kw, kb = jax.random.split(key)
    bound = 1.0 / math.sqrt(in_dim)
    w = jax.random.uniform(kw, (in_dim, out_dim), jnp.float32, -bound, bound)
    b = jax.random.uniform(kb, (1, out_dim), jnp.float32, -bound, bound)
    return w, b


def reference_forward(latent, x, params, *, num_heads):
    """Pure-JAX f32 reference matching the PyTorch module (mask=None, dropout=0)."""
    B, L, latent_dim = latent.shape
    _, S, _ = x.shape
    head_dim = latent_dim // num_heads
    q = latent @ params["wq"] + params["bq"]
    comp = x @ params["wc"] + params["bc"]
    k = comp @ params["wk"] + params["bk"]
    v = comp @ params["wv"] + params["bv"]
    q = q.reshape(B, L, num_heads, head_dim).transpose(0, 2, 1, 3)
    k = k.reshape(B, S, num_heads, head_dim).transpose(0, 2, 1, 3)
    v = v.reshape(B, S, num_heads, head_dim).transpose(0, 2, 1, 3)
    scores = jnp.einsum("bhld,bhsd->bhls", q, k) / math.sqrt(head_dim)
    attn = jax.nn.softmax(scores, axis=-1)
    out = jnp.einsum("bhls,bhsd->bhld", attn, v)
    out = out.transpose(0, 2, 1, 3).reshape(B, L, latent_dim)
    out = out @ params["wo"] + params["bo"]
    return out, attn


if __name__ == "__main__":
    # Small, deterministic configuration.
    B, L, S = 2, 8, 16
    input_dim, latent_dim, num_heads, latent_rank = 24, 32, 4, 16

    key = jax.random.PRNGKey(0)
    k_lat, k_x, k_q, k_c, k_k, k_v, k_o = jax.random.split(key, 7)

    latent = jax.random.normal(k_lat, (B, L, latent_dim), jnp.float32)
    x = jax.random.normal(k_x, (B, S, input_dim), jnp.float32)

    wq, bq = _init_linear(k_q, latent_dim, latent_dim)
    wc, bc = _init_linear(k_c, input_dim, latent_rank)
    wk, bk = _init_linear(k_k, latent_rank, latent_dim)
    wv, bv = _init_linear(k_v, latent_rank, latent_dim)
    wo, bo = _init_linear(k_o, latent_dim, latent_dim)
    params = dict(wq=wq, bq=bq, wc=wc, bc=bc, wk=wk, bk=bk,
                  wv=wv, bv=bv, wo=wo, bo=bo)

    out, attn = multihead_latent_attention(latent, x, params, num_heads=num_heads)
    out = jax.block_until_ready(out)
    attn = jax.block_until_ready(attn)

    ref_out, ref_attn = reference_forward(latent, x, params, num_heads=num_heads)
    assert out.shape == (B, L, latent_dim)
    assert attn.shape == (B, num_heads, L, S)
    # Tolerance accounts for bf16 MXU operands (f32 accumulation) and the
    # approximate-reciprocal softmax normalization vs the all-f32 reference.
    assert jnp.allclose(out, ref_out, atol=2e-2, rtol=2e-2), \
        float(jnp.max(jnp.abs(out - ref_out)))
    assert jnp.allclose(attn, ref_attn, atol=2e-2, rtol=2e-2), \
        float(jnp.max(jnp.abs(attn - ref_attn)))

    print("KERNEL_OK")
</pallas_src>

<mosaic_0001>
module attributes {stable_mosaic.version = 11 : i64} {
  func.func @mla_kernel(%arg0: i32, %arg1: memref<1x8x32xbf16, #tpu.memory_space<vmem>>, %arg2: memref<1x16x24xbf16, #tpu.memory_space<vmem>>, %arg3: memref<32x32xbf16, #tpu.memory_space<vmem>>, %arg4: memref<1x32xf32, #tpu.memory_space<vmem>>, %arg5: memref<24x16xbf16, #tpu.memory_space<vmem>>, %arg6: memref<1x16xf32, #tpu.memory_space<vmem>>, %arg7: memref<16x64xbf16, #tpu.memory_space<vmem>>, %arg8: memref<1x64xf32, #tpu.memory_space<vmem>>, %arg9: memref<32x32xbf16, #tpu.memory_space<vmem>>, %arg10: memref<1x32xf32, #tpu.memory_space<vmem>>, %arg11: memref<1x8x32xf32, #tpu.memory_space<vmem>>, %arg12: memref<1x4x8x16xf32, #tpu.memory_space<vmem>>) attributes {dimension_semantics = [#tpu.dimension_semantics<parallel>], iteration_bounds = array<i64: 2>, scalar_prefetch = 0 : i64, scratch_operands = 0 : i64, tpu.core_type = #tpu.core_type<tc>, window_params = [{transform_indices = @transform_0, window_bounds = array<i64: 1, 8, 32>}, {transform_indices = @transform_1, window_bounds = array<i64: 1, 16, 24>}, {pipeline_mode = #tpu.pipeline_mode<synchronous>, transform_indices = @transform_2, window_bounds = array<i64: 32, 32>}, {pipeline_mode = #tpu.pipeline_mode<synchronous>, transform_indices = @transform_3, window_bounds = array<i64: 1, 32>}, {pipeline_mode = #tpu.pipeline_mode<synchronous>, transform_indices = @transform_4, window_bounds = array<i64: 24, 16>}, {pipeline_mode = #tpu.pipeline_mode<synchronous>, transform_indices = @transform_5, window_bounds = array<i64: 1, 16>}, {pipeline_mode = #tpu.pipeline_mode<synchronous>, transform_indices = @transform_6, window_bounds = array<i64: 16, 64>}, {pipeline_mode = #tpu.pipeline_mode<synchronous>, transform_indices = @transform_7, window_bounds = array<i64: 1, 64>}, {pipeline_mode = #tpu.pipeline_mode<synchronous>, transform_indices = @transform_8, window_bounds = array<i64: 32, 32>}, {pipeline_mode = #tpu.pipeline_mode<synchronous>, transform_indices = @transform_9, window_bounds = array<i64: 1, 32>}, {transform_indices = @transform_10, window_bounds = array<i64: 1, 8, 32>}, {transform_indices = @transform_11, window_bounds = array<i64: 1, 4, 8, 16>}]} {
    %c0 = arith.constant 0 : index
    %c0_0 = arith.constant 0 : index
    %c0_1 = arith.constant 0 : index
    %0 = vector.load %arg1[%c0, %c0_0, %c0_1] : memref<1x8x32xbf16, #tpu.memory_space<vmem>>, vector<1x8x32xbf16>
    %1 = vector.shape_cast %0 : vector<1x8x32xbf16> to vector<8x32xbf16>
    %c0_2 = arith.constant 0 : index
    %c0_3 = arith.constant 0 : index
    %c0_4 = arith.constant 0 : index
    %2 = vector.load %arg2[%c0_2, %c0_3, %c0_4] : memref<1x16x24xbf16, #tpu.memory_space<vmem>>, vector<1x16x24xbf16>
    %3 = vector.shape_cast %2 : vector<1x16x24xbf16> to vector<16x24xbf16>
    %c0_5 = arith.constant 0 : index
    %c0_6 = arith.constant 0 : index
    %4 = vector.load %arg5[%c0_5, %c0_6] : memref<24x16xbf16, #tpu.memory_space<vmem>>, vector<24x16xbf16>
    %cst = arith.constant dense<0.000000e+00> : vector<16x16xf32>
    %5 = tpu.matmul %3, %4, %cst {dimension_numbers = #tpu.dot_dimension_numbers<[1], [0], [0], [1], [0, 0, 1, 1], [], []>} : vector<16x24xbf16>, vector<24x16xbf16>, vector<16x16xf32> -> vector<16x16xf32>
    %c0_7 = arith.constant 0 : index
    %c0_8 = arith.constant 0 : index
    %6 = vector.load %arg6[%c0_7, %c0_8] : memref<1x16xf32, #tpu.memory_space<vmem>>, vector<1x16xf32>
    %7 = vector.broadcast %6 : vector<1x16xf32> to vector<16x16xf32>
    %8 = arith.addf %5, %7 : vector<16x16xf32>
    %c0_9 = arith.constant 0 : index
    %c0_10 = arith.constant 0 : index
    %9 = vector.load %arg3[%c0_9, %c0_10] : memref<32x32xbf16, #tpu.memory_space<vmem>>, vector<32x32xbf16>
    %cst_11 = arith.constant dense<0.000000e+00> : vector<8x32xf32>
    %10 = tpu.matmul %1, %9, %cst_11 {dimension_numbers = #tpu.dot_dimension_numbers<[1], [0], [0], [1], [0, 0, 1, 1], [], []>} : vector<8x32xbf16>, vector<32x32xbf16>, vector<8x32xf32> -> vector<8x32xf32>
    %c0_12 = arith.constant 0 : index
    %c0_13 = arith.constant 0 : index
    %11 = vector.load %arg4[%c0_12, %c0_13] : memref<1x32xf32, #tpu.memory_space<vmem>>, vector<1x32xf32>
    %12 = vector.broadcast %11 : vector<1x32xf32> to vector<8x32xf32>
    %13 = arith.addf %10, %12 : vector<8x32xf32>
    %14 = arith.truncf %8 : vector<16x16xf32> to vector<16x16xbf16>
    %c0_14 = arith.constant 0 : index
    %c0_15 = arith.constant 0 : index
    %15 = vector.load %arg7[%c0_14, %c0_15] : memref<16x64xbf16, #tpu.memory_space<vmem>>, vector<16x64xbf16>
    %cst_16 = arith.constant dense<0.000000e+00> : vector<16x64xf32>
    %16 = tpu.matmul %14, %15, %cst_16 {dimension_numbers = #tpu.dot_dimension_numbers<[1], [0], [0], [1], [0, 0, 1, 1], [], []>} : vector<16x16xbf16>, vector<16x64xbf16>, vector<16x64xf32> -> vector<16x64xf32>
    %c0_17 = arith.constant 0 : index
    %c0_18 = arith.constant 0 : index
    %17 = vector.load %arg8[%c0_17, %c0_18] : memref<1x64xf32, #tpu.memory_space<vmem>>, vector<1x64xf32>
    %18 = vector.broadcast %17 : vector<1x64xf32> to vector<16x64xf32>
    %19 = arith.addf %16, %18 : vector<16x64xf32>
    %20 = vector.extract_strided_slice %19 {offsets = [0, 0], sizes = [16, 32], strides = [1, 1]} : vector<16x64xf32> to vector<16x32xf32>
    %21 = vector.extract_strided_slice %19 {offsets = [0, 32], sizes = [16, 32], strides = [1, 1]} : vector<16x64xf32> to vector<16x32xf32>
    %22 = arith.truncf %13 : vector<8x32xf32> to vector<8x32xbf16>
    %23 = arith.truncf %20 : vector<16x32xf32> to vector<16x32xbf16>
    %24 = arith.truncf %21 : vector<16x32xf32> to vector<16x32xbf16>
    %25 = vector.extract_strided_slice %22 {offsets = [0, 0], sizes = [8, 8], strides = [1, 1]} : vector<8x32xbf16> to vector<8x8xbf16>
    %26 = vector.shape_cast %25 : vector<8x8xbf16> to vector<1x8x8xbf16>
    %27 = vector.extract_strided_slice %22 {offsets = [0, 8], sizes = [8, 8], strides = [1, 1]} : vector<8x32xbf16> to vector<8x8xbf16>
    %28 = vector.shape_cast %27 : vector<8x8xbf16> to vector<1x8x8xbf16>
    %29 = vector.extract_strided_slice %22 {offsets = [0, 16], sizes = [8, 8], strides = [1, 1]} : vector<8x32xbf16> to vector<8x8xbf16>
    %30 = vector.shape_cast %29 : vector<8x8xbf16> to vector<1x8x8xbf16>
    %31 = vector.extract_strided_slice %22 {offsets = [0, 24], sizes = [8, 8], strides = [1, 1]} : vector<8x32xbf16> to vector<8x8xbf16>
    %32 = vector.shape_cast %31 : vector<8x8xbf16> to vector<1x8x8xbf16>
    %33 = tpu.concatenate %26, %28, %30, %32 in 0 : vector<1x8x8xbf16>, vector<1x8x8xbf16>, vector<1x8x8xbf16>, vector<1x8x8xbf16> -> vector<4x8x8xbf16>
    %34 = vector.extract_strided_slice %23 {offsets = [0, 0], sizes = [16, 8], strides = [1, 1]} : vector<16x32xbf16> to vector<16x8xbf16>
    %35 = vector.shape_cast %34 : vector<16x8xbf16> to vector<1x16x8xbf16>
    %36 = vector.extract_strided_slice %23 {offsets = [0, 8], sizes = [16, 8], strides = [1, 1]} : vector<16x32xbf16> to vector<16x8xbf16>
    %37 = vector.shape_cast %36 : vector<16x8xbf16> to vector<1x16x8xbf16>
    %38 = vector.extract_strided_slice %23 {offsets = [0, 16], sizes = [16, 8], strides = [1, 1]} : vector<16x32xbf16> to vector<16x8xbf16>
    %39 = vector.shape_cast %38 : vector<16x8xbf16> to vector<1x16x8xbf16>
    %40 = vector.extract_strided_slice %23 {offsets = [0, 24], sizes = [16, 8], strides = [1, 1]} : vector<16x32xbf16> to vector<16x8xbf16>
    %41 = vector.shape_cast %40 : vector<16x8xbf16> to vector<1x16x8xbf16>
    %42 = tpu.concatenate %35, %37, %39, %41 in 0 : vector<1x16x8xbf16>, vector<1x16x8xbf16>, vector<1x16x8xbf16>, vector<1x16x8xbf16> -> vector<4x16x8xbf16>
    %43 = vector.extract_strided_slice %24 {offsets = [0, 0], sizes = [16, 8], strides = [1, 1]} : vector<16x32xbf16> to vector<16x8xbf16>
    %44 = vector.shape_cast %43 : vector<16x8xbf16> to vector<1x16x8xbf16>
    %45 = vector.extract_strided_slice %24 {offsets = [0, 8], sizes = [16, 8], strides = [1, 1]} : vector<16x32xbf16> to vector<16x8xbf16>
    %46 = vector.shape_cast %45 : vector<16x8xbf16> to vector<1x16x8xbf16>
    %47 = vector.extract_strided_slice %24 {offsets = [0, 16], sizes = [16, 8], strides = [1, 1]} : vector<16x32xbf16> to vector<16x8xbf16>
    %48 = vector.shape_cast %47 : vector<16x8xbf16> to vector<1x16x8xbf16>
    %49 = vector.extract_strided_slice %24 {offsets = [0, 24], sizes = [16, 8], strides = [1, 1]} : vector<16x32xbf16> to vector<16x8xbf16>
    %50 = vector.shape_cast %49 : vector<16x8xbf16> to vector<1x16x8xbf16>
    %51 = tpu.concatenate %44, %46, %48, %50 in 0 : vector<1x16x8xbf16>, vector<1x16x8xbf16>, vector<1x16x8xbf16>, vector<1x16x8xbf16> -> vector<4x16x8xbf16>
    "tpu.trace_start"() <{level = 10 : i32, message = "hld,hsd->hls"}> : () -> ()
    %cst_19 = arith.constant dense<0.000000e+00> : vector<4x8x16xf32>
    %52 = tpu.matmul %33, %42, %cst_19 {dimension_numbers = #tpu.dot_dimension_numbers<[2], [2], [1], [1], [0, 0, 0, 1, 1, 1], [0], [0]>} : vector<4x8x8xbf16>, vector<4x16x8xbf16>, vector<4x8x16xf32> -> vector<4x8x16xf32>
    "tpu.trace_stop"() : () -> ()
    %cst_20 = arith.constant dense<0xFF800000> : vector<4x8xf32>
    %53 = vector.multi_reduction <maximumf>, %52, %cst_20 [2] : vector<4x8x16xf32> to vector<4x8xf32>
    %54 = vector.shape_cast %53 : vector<4x8xf32> to vector<4x8x1xf32>
    %55 = vector.broadcast %54 : vector<4x8x1xf32> to vector<4x8x16xf32>
    %56 = arith.subf %52, %55 : vector<4x8x16xf32>
    %57 = math.exp %56 : vector<4x8x16xf32>
    %cst_21 = arith.constant dense<0.000000e+00> : vector<4x8xf32>
    %58 = vector.multi_reduction <add>, %57, %cst_21 [2] : vector<4x8x16xf32> to vector<4x8xf32>
    %59 = vector.shape_cast %58 : vector<4x8xf32> to vector<4x8x1xf32>
    %60 = tpu.reciprocal %59 {approx = true} : vector<4x8x1xf32> -> vector<4x8x1xf32>
    %61 = vector.broadcast %60 : vector<4x8x1xf32> to vector<4x8x16xf32>
    %62 = arith.mulf %57, %61 : vector<4x8x16xf32>
    %c0_22 = arith.constant 0 : index
    %c0_23 = arith.constant 0 : index
    %c0_24 = arith.constant 0 : index
    %c0_25 = arith.constant 0 : index
    %63 = vector.load %arg12[%c0_22, %c0_23, %c0_24, %c0_25] : memref<1x4x8x16xf32, #tpu.memory_space<vmem>>, vector<1x4x8x16xf32>
    %64 = vector.shape_cast %63 : vector<1x4x8x16xf32> to vector<4x8x16xf32>
    %65 = vector.shape_cast %62 : vector<4x8x16xf32> to vector<1x4x8x16xf32>
    tpu.vector_store %arg12[%c0_22, %c0_23, %c0_24, %c0_25], %65 {strides = array<i32>} : memref<1x4x8x16xf32, #tpu.memory_space<vmem>>, vector<1x4x8x16xf32>,
    %66 = arith.truncf %62 : vector<4x8x16xf32> to vector<4x8x16xbf16>
    "tpu.trace_start"() <{level = 10 : i32, message = "hls,hsd->hld"}> : () -> ()
    %cst_26 = arith.constant dense<0.000000e+00> : vector<4x8x8xf32>
    %67 = tpu.matmul %66, %51, %cst_26 {dimension_numbers = #tpu.dot_dimension_numbers<[2], [1], [1], [2], [0, 0, 0, 1, 1, 2], [0], [0]>} : vector<4x8x16xbf16>, vector<4x16x8xbf16>, vector<4x8x8xf32> -> vector<4x8x8xf32>
    "tpu.trace_stop"() : () -> ()
    %68 = arith.truncf %67 : vector<4x8x8xf32> to vector<4x8x8xbf16>
    %69 = vector.extract_strided_slice %68 {offsets = [0, 0, 0], sizes = [1, 8, 8], strides = [1, 1, 1]} : vector<4x8x8xbf16> to vector<1x8x8xbf16>
    %70 = vector.shape_cast %69 : vector<1x8x8xbf16> to vector<8x8xbf16>
    %71 = vector.extract_strided_slice %68 {offsets = [1, 0, 0], sizes = [1, 8, 8], strides = [1, 1, 1]} : vector<4x8x8xbf16> to vector<1x8x8xbf16>
    %72 = vector.shape_cast %71 : vector<1x8x8xbf16> to vector<8x8xbf16>
    %73 = vector.extract_strided_slice %68 {offsets = [2, 0, 0], sizes = [1, 8, 8], strides = [1, 1, 1]} : vector<4x8x8xbf16> to vector<1x8x8xbf16>
    %74 = vector.shape_cast %73 : vector<1x8x8xbf16> to vector<8x8xbf16>
    %75 = vector.extract_strided_slice %68 {offsets = [3, 0, 0], sizes = [1, 8, 8], strides = [1, 1, 1]} : vector<4x8x8xbf16> to vector<1x8x8xbf16>
    %76 = vector.shape_cast %75 : vector<1x8x8xbf16> to vector<8x8xbf16>
    %77 = tpu.concatenate %70, %72, %74, %76 in 1 : vector<8x8xbf16>, vector<8x8xbf16>, vector<8x8xbf16>, vector<8x8xbf16> -> vector<8x32xbf16>
    %c0_27 = arith.constant 0 : index
    %c0_28 = arith.constant 0 : index
    %78 = vector.load %arg9[%c0_27, %c0_28] : memref<32x32xbf16, #tpu.memory_space<vmem>>, vector<32x32xbf16>
    %cst_29 = arith.constant dense<0.000000e+00> : vector<8x32xf32>
    %79 = tpu.matmul %77, %78, %cst_29 {dimension_numbers = #tpu.dot_dimension_numbers<[1], [0], [0], [1], [0, 0, 1, 1], [], []>} : vector<8x32xbf16>, vector<32x32xbf16>, vector<8x32xf32> -> vector<8x32xf32>
    %c0_30 = arith.constant 0 : index
    %c0_31 = arith.constant 0 : index
    %80 = vector.load %arg10[%c0_30, %c0_31] : memref<1x32xf32, #tpu.memory_space<vmem>>, vector<1x32xf32>
    %81 = vector.broadcast %80 : vector<1x32xf32> to vector<8x32xf32>
    %82 = arith.addf %79, %81 : vector<8x32xf32>
    %c0_32 = arith.constant 0 : index
    %c0_33 = arith.constant 0 : index
    %c0_34 = arith.constant 0 : index
    %83 = vector.load %arg11[%c0_32, %c0_33, %c0_34] : memref<1x8x32xf32, #tpu.memory_space<vmem>>, vector<1x8x32xf32>
    %84 = vector.shape_cast %83 : vector<1x8x32xf32> to vector<8x32xf32>
    %85 = vector.shape_cast %82 : vector<8x32xf32> to vector<1x8x32xf32>
    tpu.vector_store %arg11[%c0_32, %c0_33, %c0_34], %85 {strides = array<i32>} : memref<1x8x32xf32, #tpu.memory_space<vmem>>, vector<1x8x32xf32>,
    return
  }
  func.func @transform_0(%arg0: i32) -> (i32, i32, i32) {
    %c0_i32 = arith.constant 0 : i32
    %c0_i32_0 = arith.constant 0 : i32
    %c0_i32_1 = arith.constant 0 : i32
    return %arg0, %c0_i32, %c0_i32_0 : i32, i32, i32
  }
  func.func @transform_1(%arg0: i32) -> (i32, i32, i32) {
    %c0_i32 = arith.constant 0 : i32
    %c0_i32_0 = arith.constant 0 : i32
    %c0_i32_1 = arith.constant 0 : i32
    return %arg0, %c0_i32, %c0_i32_0 : i32, i32, i32
  }
  func.func @transform_2(%arg0: i32) -> (i32, i32) {
    %c0_i32 = arith.constant 0 : i32
    %c0_i32_0 = arith.constant 0 : i32
    %c0_i32_1 = arith.constant 0 : i32
    return %c0_i32, %c0_i32_0 : i32, i32
  }
  func.func @transform_3(%arg0: i32) -> (i32, i32) {
    %c0_i32 = arith.constant 0 : i32
    %c0_i32_0 = arith.constant 0 : i32
    %c0_i32_1 = arith.constant 0 : i32
    return %c0_i32, %c0_i32_0 : i32, i32
  }
  func.func @transform_4(%arg0: i32) -> (i32, i32) {
    %c0_i32 = arith.constant 0 : i32
    %c0_i32_0 = arith.constant 0 : i32
    %c0_i32_1 = arith.constant 0 : i32
    return %c0_i32, %c0_i32_0 : i32, i32
  }
  func.func @transform_5(%arg0: i32) -> (i32, i32) {
    %c0_i32 = arith.constant 0 : i32
    %c0_i32_0 = arith.constant 0 : i32
    %c0_i32_1 = arith.constant 0 : i32
    return %c0_i32, %c0_i32_0 : i32, i32
  }
  func.func @transform_6(%arg0: i32) -> (i32, i32) {
    %c0_i32 = arith.constant 0 : i32
    %c0_i32_0 = arith.constant 0 : i32
    %c0_i32_1 = arith.constant 0 : i32
    return %c0_i32, %c0_i32_0 : i32, i32
  }
  func.func @transform_7(%arg0: i32) -> (i32, i32) {
    %c0_i32 = arith.constant 0 : i32
    %c0_i32_0 = arith.constant 0 : i32
    %c0_i32_1 = arith.constant 0 : i32
    return %c0_i32, %c0_i32_0 : i32, i32
  }
  func.func @transform_8(%arg0: i32) -> (i32, i32) {
    %c0_i32 = arith.constant 0 : i32
    %c0_i32_0 = arith.constant 0 : i32
    %c0_i32_1 = arith.constant 0 : i32
    return %c0_i32, %c0_i32_0 : i32, i32
  }
  func.func @transform_9(%arg0: i32) -> (i32, i32) {
    %c0_i32 = arith.constant 0 : i32
    %c0_i32_0 = arith.constant 0 : i32
    %c0_i32_1 = arith.constant 0 : i32
    return %c0_i32, %c0_i32_0 : i32, i32
  }
  func.func @transform_10(%arg0: i32) -> (i32, i32, i32) {
    %c0_i32 = arith.constant 0 : i32
    %c0_i32_0 = arith.constant 0 : i32
    %c0_i32_1 = arith.constant 0 : i32
    return %arg0, %c0_i32, %c0_i32_0 : i32, i32, i32
  }
  func.func @transform_11(%arg0: i32) -> (i32, i32, i32, i32) {
    %c0_i32 = arith.constant 0 : i32
    %c0_i32_0 = arith.constant 0 : i32
    %c0_i32_1 = arith.constant 0 : i32
    %c0_i32_2 = arith.constant 0 : i32
    return %arg0, %c0_i32, %c0_i32_0, %c0_i32_1 : i32, i32, i32, i32
  }
}

</mosaic_0001>

<llo_original>
// kernel: tpu_custom_call.1
$region0: #{tpu_custom_call.1}
  #allocation0 [shape = 'u32[]', space=smem, size = 0x4, offset = 0x4, fixed_abs, tag = 'smem constant byte address 0x4 - core index']
  #allocation1 [shape = 'u32[144,128]{1,0:T(1,128)}', space=vmem, size = 0x12000, scoped, tag = 'internal scratch']
  %s0 = inlined_call_operand.hbm [shape: bf16[2,8,32], index: 0, kind: input, shape index: {}]
  %s1 = inlined_call_operand.vmem [shape: bf16[2,16,24], index: 1, kind: input, shape index: {}]
  %s2 = inlined_call_operand.hbm [shape: bf16[32,32], index: 2, kind: input, shape index: {}]
  %s3 = inlined_call_operand.vmem [shape: f32[1,32], index: 3, kind: input, shape index: {}]
  %s4 = inlined_call_operand.vmem [shape: bf16[24,16], index: 4, kind: input, shape index: {}]
  %s5 = inlined_call_operand.vmem [shape: f32[1,16], index: 5, kind: input, shape index: {}]
  %s6 = inlined_call_operand.vmem [shape: bf16[16,64], index: 6, kind: input, shape index: {}]
  %s7 = inlined_call_operand.vmem [shape: f32[1,64], index: 7, kind: input, shape index: {}]
  %s8 = inlined_call_operand.vmem [shape: bf16[32,32], index: 8, kind: input, shape index: {}]
  %s9 = inlined_call_operand.vmem [shape: f32[1,32], index: 9, kind: input, shape index: {}]
  %s10 = inlined_call_operand.hbm [shape: f32[2,8,32], index: 10, kind: output, shape index: {0}]
  %s11 = inlined_call_operand.hbm [shape: f32[2,4,8,16], index: 11, kind: output, shape index: {1}]
  %12 = xla_tuple %s10, %s11
  %s13 = sld [smem:[#allocation0]]
  $region89: #{tpu_custom_call.1} parent=0
    _
  %s15 = ssub.s32 1, %s13
  %s16 = scalar_select 0, %s15, %s13
  $region1: #{tpu_custom_call.1} parent=0
    #allocation2 [shape = 'u8[4096]{0}', space=vmem, size = 0x1000, scoped, tag = 'input window, operand 0']
    #allocation3 [shape = 's32[2]{0}', space=sflag, size = 0x8, scoped, tag = 'scoped memory for tpu_custom_call.1']
    #allocation4 [shape = 's32[2]{0}', space=sflag, size = 0x8, scoped, tag = 'scoped memory for tpu_custom_call.1']
    #allocation5 [shape = 'u8[8192]{0}', space=vmem, size = 0x2000, scoped, tag = 'input window, operand 2, single buffered']
    #allocation6 [shape = 's32[1]{0}', space=sflag, size = 0x4, scoped, tag = 'scoped memory for tpu_custom_call.1']
    #allocation7 [shape = 'u8[8192]{0}', space=vmem, size = 0x2000, scoped, tag = 'output window, operand 0']
    #allocation8 [shape = 'u8[32768]{0}', space=vmem, size = 0x8000, scoped, tag = 'output window, operand 1']
    #allocation9 [shape = 's32[2]{0}', space=sflag, size = 0x8, scoped, tag = 'scoped memory for tpu_custom_call.1']
    %17 = vsyncpa [#allocation3], 0
    %s18 = scalar_lea.sflag [#allocation3], 1
    %19 = vsyncpa %s18, 0
    %20 = vsyncpa [#allocation6], 0
    %21 = vsyncpa [#allocation4], 0
    %s22 = scalar_lea.sflag [#allocation4], 1
    %23 = vsyncpa %s22, 0
    %24 = vsyncpa [#allocation9], 0
    %s25 = scalar_lea.sflag [#allocation9], 1
    %26 = vsyncpa %s25, 0
    loop: start=0, step=1, limit=4
    $region2: #{tpu_custom_call.1} parent=1 // loop_pre_header
      _
    $region3: #{tpu_custom_call.1} parent=1 // loop_header
      %s28 = sphi 0, %s32
      %p29 = scmp.ge.s32.totalorder %s28, 4
      %s38 = sphi 0, %s40
      %s41 = sphi 0, %s38
      %s42 = sphi 0, %s41
      %s58 = sphi 0, %s42
      %s64 = sphi 0, %s66
      %s67 = sphi 0, %s64
      %s68 = sphi 0, %s67
      %s84 = sphi 0, %s68
      %s88 = sphi 0, %s88
      %s90 = sphi 0, %s88
      %s91 = sphi 0, %s90
      %s105 = sphi 0, %s91
      %s109 = sphi 0, %s109
      %s111 = sphi 0, %s109
      %s112 = sphi 0, %s111
      %s126 = sphi 0, %s112
      %s130 = sphi 0, %s130
      %s132 = sphi 0, %s130
      %s133 = sphi 0, %s132
      %s147 = sphi 0, %s133
      %s151 = sphi 0, %s151
      %s153 = sphi 0, %s151
      %s154 = sphi 0, %s153
      %s168 = sphi 0, %s154
      %s172 = sphi 0, %s172
      %s174 = sphi 0, %s172
      %s175 = sphi 0, %s174
      %s189 = sphi 0, %s175
      %s193 = sphi 0, %s193
      %s195 = sphi 0, %s193
      %s196 = sphi 0, %s195
      %s210 = sphi 0, %s196
      %s214 = sphi 0, %s214
      %s216 = sphi 0, %s214
      %s217 = sphi 0, %s216
      %s231 = sphi 0, %s217
      %s235 = sphi 0, %s235
      %s237 = sphi 0, %s235
      %s238 = sphi 0, %s237
      %s252 = sphi 0, %s238
      %s258 = sphi 0, %s260
      %s261 = sphi 0, %s258
      %s262 = sphi 0, %s261
      %s278 = sphi 0, %s262
      %s284 = sphi 0, %s286
      %s287 = sphi 0, %s284
      %s288 = sphi 0, %s287
      %s304 = sphi 0, %s288
    $region4: #{tpu_custom_call.1} parent=1 // loop_header_branch
      %31 = sbr.rel (%p29) target = $region8
    $region5: #{tpu_custom_call.1} parent=1 // loop_body
      %s33 = ssub.s32 %s28, 1
      %s34 = ssub.s32 %s28, 2
      %s35 = sadd.s32 %s28, 1
      %s36 = ssub.s32 %s28, %s35
      %p37 = scmp.eq.s32.totalorder %s36, 0
      %s39 = sadd.s32 %s38, 1
      %s40 = scalar_select %p37, %s38, %s39
      %p43 = pneg %p37
      %p44 = scmp.eq.s32.totalorder %s28, 1
      %p45 = por %p43, %p44
      %p46 = scmp.ne.s32.totalorder %s38, %s41
      %p47 = scmp.eq.s32.totalorder %s28, 0
      %p48 = por %p46, %p47
      %p49 = scmp.ne.s32.totalorder %s38, %s41
      %p50 = scmp.eq.s32.totalorder %s33, 1
      %p51 = por %p49, %p50
      %p52 = scmp.ne.s32.totalorder %s41, %s42
      %p53 = scmp.eq.s32.totalorder %s33, 0
      %p54 = por %p52, %p53
      %p55 = scmp.ne.s32.totalorder %s41, %s42
      %p56 = scmp.eq.s32.totalorder %s34, 1
      %p57 = por %p55, %p56
      %p59 = scmp.ne.s32.totalorder %s42, %s58
      %p60 = scmp.eq.s32.totalorder %s34, 0
      %p61 = por %p59, %p60
      %s62 = ssub.s32 %s28, %s35
      %p63 = scmp.eq.s32.totalorder %s62, 0
      %s65 = sadd.s32 %s64, 1
      %s66 = scalar_select %p63, %s64, %s65
      %p69 = pneg %p63
      %p70 = scmp.eq.s32.totalorder %s28, 1
      %p71 = por %p69, %p70
      %p72 = scmp.ne.s32.totalorder %s64, %s67
      %p73 = scmp.eq.s32.totalorder %s28, 0
      %p74 = por %p72, %p73
      %p75 = scmp.ne.s32.totalorder %s64, %s67
      %p76 = scmp.eq.s32.totalorder %s33, 1
      %p77 = por %p75, %p76
      %p78 = scmp.ne.s32.totalorder %s67, %s68
      %p79 = scmp.eq.s32.totalorder %s33, 0
      %p80 = por %p78, %p79
      %p81 = scmp.ne.s32.totalorder %s67, %s68
      %p82 = scmp.eq.s32.totalorder %s34, 1
      %p83 = por %p81, %p82
      %p85 = scmp.ne.s32.totalorder %s68, %s84
      %p86 = scmp.eq.s32.totalorder %s34, 0
      %p87 = por %p85, %p86
      %s89 = sadd.s32 %s88, 1
      %p92 = scmp.eq.s32.totalorder %s28, 1
      %p93 = scmp.ne.s32.totalorder %s88, %s90
      %p94 = scmp.eq.s32.totalorder %s28, 0
      %p95 = por %p93, %p94
      %p96 = scmp.ne.s32.totalorder %s88, %s90
      %p97 = scmp.eq.s32.totalorder %s33, 1
      %p98 = por %p96, %p97
      %p99 = scmp.ne.s32.totalorder %s90, %s91
      %p100 = scmp.eq.s32.totalorder %s33, 0
      %p101 = por %p99, %p100
      %p102 = scmp.ne.s32.totalorder %s90, %s91
      %p103 = scmp.eq.s32.totalorder %s34, 1
      %p104 = por %p102, %p103
      %p106 = scmp.ne.s32.totalorder %s91, %s105
      %p107 = scmp.eq.s32.totalorder %s34, 0
      %p108 = por %p106, %p107
      %s110 = sadd.s32 %s109, 1
      %p113 = scmp.eq.s32.totalorder %s28, 1
      %p114 = scmp.ne.s32.totalorder %s109, %s111
      %p115 = scmp.eq.s32.totalorder %s28, 0
      %p116 = por %p114, %p115
      %p117 = scmp.ne.s32.totalorder %s109, %s111
      %p118 = scmp.eq.s32.totalorder %s33, 1
      %p119 = por %p117, %p118
      %p120 = scmp.ne.s32.totalorder %s111, %s112
      %p121 = scmp.eq.s32.totalorder %s33, 0
      %p122 = por %p120, %p121
      %p123 = scmp.ne.s32.totalorder %s111, %s112
      %p124 = scmp.eq.s32.totalorder %s34, 1
      %p125 = por %p123, %p124
      %p127 = scmp.ne.s32.totalorder %s112, %s126
      %p128 = scmp.eq.s32.totalorder %s34, 0
      %p129 = por %p127, %p128
      %s131 = sadd.s32 %s130, 1
      %p134 = scmp.eq.s32.totalorder %s28, 1
      %p135 = scmp.ne.s32.totalorder %s130, %s132
      %p136 = scmp.eq.s32.totalorder %s28, 0
      %p137 = por %p135, %p136
      %p138 = scmp.ne.s32.totalorder %s130, %s132
      %p139 = scmp.eq.s32.totalorder %s33, 1
      %p140 = por %p138, %p139
      %p141 = scmp.ne.s32.totalorder %s132, %s133
      %p142 = scmp.eq.s32.totalorder %s33, 0
      %p143 = por %p141, %p142
      %p144 = scmp.ne.s32.totalorder %s132, %s133
      %p145 = scmp.eq.s32.totalorder %s34, 1
      %p146 = por %p144, %p145
      %p148 = scmp.ne.s32.totalorder %s133, %s147
      %p149 = scmp.eq.s32.totalorder %s34, 0
      %p150 = por %p148, %p149
      %s152 = sadd.s32 %s151, 1
      %p155 = scmp.eq.s32.totalorder %s28, 1
      %p156 = scmp.ne.s32.totalorder %s151, %s153
      %p157 = scmp.eq.s32.totalorder %s28, 0
      %p158 = por %p156, %p157
      %p159 = scmp.ne.s32.totalorder %s151, %s153
      %p160 = scmp.eq.s32.totalorder %s33, 1
      %p161 = por %p159, %p160
      %p162 = scmp.ne.s32.totalorder %s153, %s154
      %p163 = scmp.eq.s32.totalorder %s33, 0
      %p164 = por %p162, %p163
      %p165 = scmp.ne.s32.totalorder %s153, %s154
      %p166 = scmp.eq.s32.totalorder %s34, 1
      %p167 = por %p165, %p166
      %p169 = scmp.ne.s32.totalorder %s154, %s168
      %p170 = scmp.eq.s32.totalorder %s34, 0
      %p171 = por %p169, %p170
      %s173 = sadd.s32 %s172, 1
      %p176 = scmp.eq.s32.totalorder %s28, 1
      %p177 = scmp.ne.s32.totalorder %s172, %s174
      %p178 = scmp.eq.s32.totalorder %s28, 0
      %p179 = por %p177, %p178
      %p180 = scmp.ne.s32.totalorder %s172, %s174
      %p181 = scmp.eq.s32.totalorder %s33, 1
      %p182 = por %p180, %p181
      %p183 = scmp.ne.s32.totalorder %s174, %s175
      %p184 = scmp.eq.s32.totalorder %s33, 0
      %p185 = por %p183, %p184
      %p186 = scmp.ne.s32.totalorder %s174, %s175
      %p187 = scmp.eq.s32.totalorder %s34, 1
      %p188 = por %p186, %p187
      %p190 = scmp.ne.s32.totalorder %s175, %s189
      %p191 = scmp.eq.s32.totalorder %s34, 0
      %p192 = por %p190, %p191
      %s194 = sadd.s32 %s193, 1
      %p197 = scmp.eq.s32.totalorder %s28, 1
      %p198 = scmp.ne.s32.totalorder %s193, %s195
      %p199 = scmp.eq.s32.totalorder %s28, 0
      %p200 = por %p198, %p199
      %p201 = scmp.ne.s32.totalorder %s193, %s195
      %p202 = scmp.eq.s32.totalorder %s33, 1
      %p203 = por %p201, %p202
      %p204 = scmp.ne.s32.totalorder %s195, %s196
      %p205 = scmp.eq.s32.totalorder %s33, 0
      %p206 = por %p204, %p205
      %p207 = scmp.ne.s32.totalorder %s195, %s196
      %p208 = scmp.eq.s32.totalorder %s34, 1
      %p209 = por %p207, %p208
      %p211 = scmp.ne.s32.totalorder %s196, %s210
      %p212 = scmp.eq.s32.totalorder %s34, 0
      %p213 = por %p211, %p212
      %s215 = sadd.s32 %s214, 1
      %p218 = scmp.eq.s32.totalorder %s28, 1
      %p219 = scmp.ne.s32.totalorder %s214, %s216
      %p220 = scmp.eq.s32.totalorder %s28, 0
      %p221 = por %p219, %p220
      %p222 = scmp.ne.s32.totalorder %s214, %s216
      %p223 = scmp.eq.s32.totalorder %s33, 1
      %p224 = por %p222, %p223
      %p225 = scmp.ne.s32.totalorder %s216, %s217
      %p226 = scmp.eq.s32.totalorder %s33, 0
      %p227 = por %p225, %p226
      %p228 = scmp.ne.s32.totalorder %s216, %s217
      %p229 = scmp.eq.s32.totalorder %s34, 1
      %p230 = por %p228, %p229
      %p232 = scmp.ne.s32.totalorder %s217, %s231
      %p233 = scmp.eq.s32.totalorder %s34, 0
      %p234 = por %p232, %p233
      %s236 = sadd.s32 %s235, 1
      %p239 = scmp.eq.s32.totalorder %s28, 1
      %p240 = scmp.ne.s32.totalorder %s235, %s237
      %p241 = scmp.eq.s32.totalorder %s28, 0
      %p242 = por %p240, %p241
      %p243 = scmp.ne.s32.totalorder %s235, %s237
      %p244 = scmp.eq.s32.totalorder %s33, 1
      %p245 = por %p243, %p244
      %p246 = scmp.ne.s32.totalorder %s237, %s238
      %p247 = scmp.eq.s32.totalorder %s33, 0
      %p248 = por %p246, %p247
      %p249 = scmp.ne.s32.totalorder %s237, %s238
      %p250 = scmp.eq.s32.totalorder %s34, 1
      %p251 = por %p249, %p250
      %p253 = scmp.ne.s32.totalorder %s238, %s252
      %p254 = scmp.eq.s32.totalorder %s34, 0
      %p255 = por %p253, %p254
      %s256 = ssub.s32 %s28, %s35
      %p257 = scmp.eq.s32.totalorder %s256, 0
      %s259 = sadd.s32 %s258, 1
      %s260 = scalar_select %p257, %s258, %s259
      %p263 = pneg %p257
      %p264 = scmp.eq.s32.totalorder %s28, 1
      %p265 = por %p263, %p264
      %p266 = scmp.ne.s32.totalorder %s258, %s261
      %p267 = scmp.eq.s32.totalorder %s28, 0
      %p268 = por %p266, %p267
      %p269 = scmp.ne.s32.totalorder %s258, %s261
      %p270 = scmp.eq.s32.totalorder %s33, 1
      %p271 = por %p269, %p270
      %p272 = scmp.ne.s32.totalorder %s261, %s262
      %p273 = scmp.eq.s32.totalorder %s33, 0
      %p274 = por %p272, %p273
      %p275 = scmp.ne.s32.totalorder %s261, %s262
      %p276 = scmp.eq.s32.totalorder %s34, 1
      %p277 = por %p275, %p276
      %p279 = scmp.ne.s32.totalorder %s262, %s278
      %p280 = scmp.eq.s32.totalorder %s34, 0
      %p281 = por %p279, %p280
      %s282 = ssub.s32 %s28, %s35
      %p283 = scmp.eq.s32.totalorder %s282, 0
      %s285 = sadd.s32 %s284, 1
      %s286 = scalar_select %p283, %s284, %s285
      %p289 = pneg %p283
      %p290 = scmp.eq.s32.totalorder %s28, 1
      %p291 = por %p289, %p290
      %p292 = scmp.ne.s32.totalorder %s284, %s287
      %p293 = scmp.eq.s32.totalorder %s28, 0
      %p294 = por %p292, %p293
      %p295 = scmp.ne.s32.totalorder %s284, %s287
      %p296 = scmp.eq.s32.totalorder %s33, 1
      %p297 = por %p295, %p296
      %p298 = scmp.ne.s32.totalorder %s287, %s288
      %p299 = scmp.eq.s32.totalorder %s33, 0
      %p300 = por %p298, %p299
      %p301 = scmp.ne.s32.totalorder %s287, %s288
      %p302 = scmp.eq.s32.totalorder %s34, 1
      %p303 = por %p301, %p302
      %p305 = scmp.ne.s32.totalorder %s288, %s304
      %p306 = scmp.eq.s32.totalorder %s34, 0
      %p307 = por %p305, %p306
      %p308 = scmp.le.s32.totalorder 1, %s28
      %p309 = scmp.lt.s32.totalorder %s28, 3
      %p310 = pnand %p308, %p309
      %p311 = pneg %p310
      // Predicated region
      $region9: #{tpu_custom_call.1} parent=5 // pred_check
        _
      $region10: #{tpu_custom_call.1} parent=5 // pred_check_branch
        %313 = sbr.rel (%p310) target = $region12
      $region11: #{tpu_custom_call.1} parent=5 // pred_region
        %s314 = ssub.s32 %s28, 1
        // Predicated region
        $region13: #{tpu_custom_call.1} parent=11 // pred_check
          %p315 = pneg %p101
        $region14: #{tpu_custom_call.1} parent=11 // pred_check_branch
          %317 = sbr.rel (%p315) target = $region16
        $region15: #{tpu_custom_call.1} parent=11 // pred_region
          %s319 = ssub.s32 256, 256
          %320 = vsyncadd [#allocation6], %s319
          %s321 = sshll.u32 [#allocation5], 4
          %s322 = int_to_ptr.vmem [resolvable:$true] %s321
          %327 = dma.hbm_to_vmem [thread:$0]  %s2, 256, %s322, [#allocation6], 64, 64, 4
        $region16: #{tpu_custom_call.1} parent=11 // pred_fallthru
          _
        // Predicated region
        $region17: #{tpu_custom_call.1} parent=11 // pred_check
          %p328 = pneg %p122
        $region18: #{tpu_custom_call.1} parent=11 // pred_check_branch
          %330 = sbr.rel (%p328) target = $region20
        $region19: #{tpu_custom_call.1} parent=11 // pred_region
          _
        $region20: #{tpu_custom_call.1} parent=11 // pred_fallthru
          _
        // Predicated region
        $region21: #{tpu_custom_call.1} parent=11 // pred_check
          %p331 = pneg %p143
        $region22: #{tpu_custom_call.1} parent=11 // pred_check_branch
          %333 = sbr.rel (%p331) target = $region24
        $region23: #{tpu_custom_call.1} parent=11 // pred_region
          _
        $region24: #{tpu_custom_call.1} parent=11 // pred_fallthru
          _
        // Predicated region
        $region25: #{tpu_custom_call.1} parent=11 // pred_check
          %p334 = pneg %p164
        $region26: #{tpu_custom_call.1} parent=11 // pred_check_branch
          %336 = sbr.rel (%p334) target = $region28
        $region27: #{tpu_custom_call.1} parent=11 // pred_region
          _
        $region28: #{tpu_custom_call.1} parent=11 // pred_fallthru
          _
        // Predicated region
        $region29: #{tpu_custom_call.1} parent=11 // pred_check
          %p337 = pneg %p185
        $region30: #{tpu_custom_call.1} parent=11 // pred_check_branch
          %339 = sbr.rel (%p337) target = $region32
        $region31: #{tpu_custom_call.1} parent=11 // pred_region
          _
        $region32: #{tpu_custom_call.1} parent=11 // pred_fallthru
          _
        // Predicated region
        $region33: #{tpu_custom_call.1} parent=11 // pred_check
          %p340 = pneg %p206
        $region34: #{tpu_custom_call.1} parent=11 // pred_check_branch
          %342 = sbr.rel (%p340) target = $region36
        $region35: #{tpu_custom_call.1} parent=11 // pred_region
          _
        $region36: #{tpu_custom_call.1} parent=11 // pred_fallthru
          _
        // Predicated region
        $region37: #{tpu_custom_call.1} parent=11 // pred_check
          %p343 = pneg %p227
        $region38: #{tpu_custom_call.1} parent=11 // pred_check_branch
          %345 = sbr.rel (%p343) target = $region40
        $region39: #{tpu_custom_call.1} parent=11 // pred_region
          _
        $region40: #{tpu_custom_call.1} parent=11 // pred_fallthru
          _
        // Predicated region
        $region41: #{tpu_custom_call.1} parent=11 // pred_check
          %p346 = pneg %p248
        $region42: #{tpu_custom_call.1} parent=11 // pred_check_branch
          %348 = sbr.rel (%p346) target = $region44
        $region43: #{tpu_custom_call.1} parent=11 // pred_region
          _
        $region44: #{tpu_custom_call.1} parent=11 // pred_fallthru
          _
      $region12: #{tpu_custom_call.1} parent=5 // pred_fallthru
        _
      %p349 = scmp.lt.s32.totalorder %s28, 2
      // Predicated region
      $region45: #{tpu_custom_call.1} parent=5 // pred_check
        %p350 = pneg %p349
      $region46: #{tpu_custom_call.1} parent=5 // pred_check_branch
        %352 = sbr.rel (%p350) target = $region48
      $region47: #{tpu_custom_call.1} parent=5 // pred_region
        // Predicated region
        $region49: #{tpu_custom_call.1} parent=47 // pred_check
          %p353 = pneg %p48
        $region50: #{tpu_custom_call.1} parent=47 // pred_check_branch
          %355 = sbr.rel (%p353) target = $region52
        $region51: #{tpu_custom_call.1} parent=47 // pred_region
          %s356 = sand.u32 %s38, 1
          %s357 = scalar_lea.sflag [#allocation3], %s356
          %s358 = sand.u32 %s38, 1
          %s359 = smul.addr %s358, 4
          %s360 = scalar_lea.vmem [#allocation2], %s359
          %s362 = ssub.s32 64, 64
          %363 = vsyncadd %s357, %s362
          %s364 = smul.addr %s28, 64
          %s365 = scalar_lea.hbm %s0, %s364
          %s367 = sshll.u32 %s360, 4
          %s368 = int_to_ptr.vmem [resolvable:$true] %s367
          %370 = dma.hbm_to_vmem [thread:$0]  %s365, 64, %s368, %s357
        $region52: #{tpu_custom_call.1} parent=47 // pred_fallthru
          _
        // Predicated region
        $region53: #{tpu_custom_call.1} parent=47 // pred_check
          %p371 = pneg %p74
        $region54: #{tpu_custom_call.1} parent=47 // pred_check_branch
          %373 = sbr.rel (%p371) target = $region56
        $region55: #{tpu_custom_call.1} parent=47 // pred_region
          %p374 = scmp.lt.s32.totalorder %s28, 1
          %s375 = scalar_select %p374, %s28, 1
          %s376 = smul.addr %s375, 2
          %s377 = smul.addr %s376, 4
          %s378 = scalar_lea.vmem %s1, %s377
        $region56: #{tpu_custom_call.1} parent=47 // pred_fallthru
          _
      $region48: #{tpu_custom_call.1} parent=5 // pred_fallthru
        _
      %p379 = scmp.le.s32.totalorder 1, %s28
      %p380 = scmp.lt.s32.totalorder %s28, 3
      %p381 = pnand %p379, %p380
      %p382 = pneg %p381
      // Predicated region
      $region57: #{tpu_custom_call.1} parent=5 // pred_check
        _
      $region58: #{tpu_custom_call.1} parent=5 // pred_check_branch
        %384 = sbr.rel (%p381) target = $region60
      $region59: #{tpu_custom_call.1} parent=5 // pred_region
        %s385 = ssub.s32 %s28, 1
        %s386 = sand.u32 %s41, 1
        %s387 = scalar_lea.sflag [#allocation3], %s386
        %s388 = sand.u32 %s41, 1
        %s389 = smul.addr %s388, 4
        %s390 = scalar_lea.vmem [#allocation2], %s389
        // Predicated region
        $region61: #{tpu_custom_call.1} parent=59 // pred_check
          %p391 = pneg %p54
        $region62: #{tpu_custom_call.1} parent=59 // pred_check_branch
          %393 = sbr.rel (%p391) target = $region64
        $region63: #{tpu_custom_call.1} parent=59 // pred_region
          %394 = dma.done %s387, 64
        $region64: #{tpu_custom_call.1} parent=59 // pred_fallthru
          _
        // Predicated region
        $region65: #{tpu_custom_call.1} parent=59 // pred_check
          %p395 = pneg %p101
        $region66: #{tpu_custom_call.1} parent=59 // pred_check_branch
          %397 = sbr.rel (%p395) target = $region68
        $region67: #{tpu_custom_call.1} parent=59 // pred_region
          %398 = dma.done [#allocation6], 256
        $region68: #{tpu_custom_call.1} parent=59 // pred_fallthru
          _
        %s399 = sand.u32 %s41, 1
        %s400 = scalar_lea.sflag [#allocation3], %s399
        %s401 = sand.u32 %s41, 1
        %s402 = smul.addr %s401, 4
        %s403 = scalar_lea.vmem [#allocation2], %s402
        %p404 = pneg %p54
        %p405 = pneg %p51
        %p406 = scmp.lt.s32.totalorder %s33, 1
        %s407 = scalar_select %p406, %s33, 1
        %s408 = smul.addr %s407, 2
        %s409 = smul.addr %s408, 4
        %s410 = scalar_lea.vmem %s1, %s409
        %p411 = pneg %p80
        %p412 = pneg %p77
        %p413 = pneg %p101
        %p414 = pneg %p98
        %p415 = pneg %p122
        %p416 = pneg %p119
        %p417 = pneg %p143
        %p418 = pneg %p140
        %p419 = pneg %p164
        %p420 = pneg %p161
        %p421 = pneg %p185
        %p422 = pneg %p182
        %p423 = pneg %p206
        %p424 = pneg %p203
        %p425 = pneg %p227
        %p426 = pneg %p224
        %p427 = pneg %p248
        %p428 = pneg %p245
        %p429 = pneg %p274
        %p430 = pneg %p271
        %s431 = sand.u32 %s261, 1
        %s432 = scalar_lea.sflag [#allocation4], %s431
        %s433 = sand.u32 %s261, 1
        %s434 = smul.addr %s433, 8
        %s435 = scalar_lea.vmem [#allocation7], %s434
        %p436 = pneg %p300
        %p437 = pneg %p297
        %s438 = sand.u32 %s287, 1
        %s439 = scalar_lea.sflag [#allocation9], %s438
        %s440 = sand.u32 %s287, 1
        %s441 = smul.addr %s440, 32
        %s442 = scalar_lea.vmem [#allocation8], %s441
        %p443 = scmp.lt.s32.totalorder %s33, 1
        %s444 = scalar_select %p443, %s33, 1
        %s445 = smul.addr %s444, 2
        %s446 = smul.addr %s445, 4
        %s447 = scalar_lea.vmem %s1, %s446
        %v449 = vld [vmem:[%s390] sm:$0xf]
        %v450 = vld [vmem:[%s447] sm:$0xf]
        %v451 = vld [vmem:[%s447 + $0x4] sm:$0xf]
        %v452 = vld [vmem:[%s4] sm:$0xf]
        %v453 = vld [vmem:[%s4 + $0x4] sm:$0xf]
        %v454 = vld [vmem:[%s4 + $0x8] sm:$0xf]
        %v455 = vld [vmem:[%s5] sm:$0x1]
        %v457 = vlaneseq
        %v458 = vshrl.u32 %v457, 7
        %v459 = vsub.s32 0, %v458
        %v460 = vrot.slane %v455, %v459
        %v464 = vunpack.c.l.b16 %v450
        %v465 = vunpack.c.l.b16 %v451
        %v466 = vpack.c.b16 %v465, %v464
        %v470 = vunpack.c.l.b16 %v452
        %v471 = vunpack.c.l.b16 %v453
        %v472 = vunpack.c.l.b16 %v454
        %v473 = vpack.c.b16 %v471, %v470
        %v474 = vpack.c.b16 %v472, %v472
        %vm476 = vcmask 195584
        %v478 = vsel %vm476, %v466, 0
        %vm480 = vcmask 1043456
        %v482 = vsel %vm480, %v474, 0
        %484 = vmatprep.subr.bf16.mxu0 0
        %485 = vmatpush1.bf16.msra.mxu0 %v473
        %486 = vmatprep.subr.bf16.mxu0 0
        %487 = vmatpush1.bf16.msra.mxu0 %v482
        %488 = vmatprep.subr.bf16.mxu0 0
        %489 = vmatpush1.bf16.msra.mxu0 0
        %490 = vmatprep.subr.bf16.mxu0 0
        %491 = vmatpush1.bf16.msra.mxu0 0
        %492 = vmatprep.subr.bf16.mxu0 0
        %493 = vmatpush1.bf16.msra.mxu0 0
        %494 = vmatprep.subr.bf16.mxu0 0
        %495 = vmatpush1.bf16.msra.mxu0 0
        %496 = vmatprep.subr.bf16.mxu0 0
        %497 = vmatpush1.bf16.msra.mxu0 0
        %498 = vmatprep.subr.bf16.mxu0 0
        %499 = vmatpush1.bf16.msra.mxu0 0
        %500 = vmatprep.subr.bf16.mxu0 0
        %501 = vmatpush1.bf16.msra.mxu0 0
        %502 = vmatprep.subr.bf16.mxu0 0
        %503 = vmatpush1.bf16.msra.mxu0 0
        %504 = vmatprep.subr.bf16.mxu0 0
        %505 = vmatpush1.bf16.msra.mxu0 0
        %506 = vmatprep.subr.bf16.mxu0 0
        %507 = vmatpush1.bf16.msra.mxu0 0
        %508 = vmatprep.subr.bf16.mxu0 0
        %509 = vmatpush1.bf16.msra.mxu0 0
        %510 = vmatprep.subr.bf16.mxu0 0
        %511 = vmatpush1.bf16.msra.mxu0 0
        %512 = vmatprep.subr.bf16.mxu0 0
        %513 = vmatpush1.bf16.msra.mxu0 0
        %514 = vmatprep.subr.bf16.mxu0 0
        %515 = vmatpush1.bf16.msra.mxu0 0
        %516 = vmatprep.mubr.bf16.mxu0 0
        %517 = vmatmul.mubr.bf16.gmra.mrb[0].mxu0 %v478
        %v518 = vpop.f32.mrb[0].mxu0
        %v519 = vadd.f32 %v460, %v518
        %v520 = vpop.f32.mrb[0].mxu0
        %v521 = vpop.f32.mrb[0].mxu0
        %v522 = vadd.f32 %v460, %v521
        %v523 = vpop.f32.mrb[0].mxu0
        %524 = vdwg.mxu0
        %v525 = vld [vmem:[#allocation5] sm:$0xf]
        %v526 = vld [vmem:[#allocation5 + $0x4] sm:$0xf]
        %v527 = vld [vmem:[#allocation5 + $0x8] sm:$0xf]
        %v528 = vld [vmem:[#allocation5 + $0xc] sm:$0xf]
        %v529 = vld [vmem:[%s3] sm:$0x1]
        %v531 = vlaneseq
        %v532 = vshrl.u32 %v531, 7
        %v533 = vsub.s32 0, %v532
        %v534 = vrot.slane %v529, %v533
        %v540 = vunpack.c.l.b16 %v525
        %v541 = vunpack.c.l.b16 %v526
        %v542 = vunpack.c.l.b16 %v527
        %v543 = vunpack.c.l.b16 %v528
        %v544 = vpack.c.b16 %v541, %v540
        %v545 = vpack.c.b16 %v543, %v542
        %vm548 = vcmask 261120
        %v550 = vsel %vm548, %v449, 0
        %552 = vmatprep.subr.bf16.mxu0 0
        %553 = vmatpush1.bf16.msra.mxu0 %v544
        %554 = vmatprep.subr.bf16.mxu0 0
        %555 = vmatpush1.bf16.msra.mxu0 %v545
        %556 = vmatprep.subr.bf16.mxu0 0
        %557 = vmatpush1.bf16.msra.mxu0 0
        %558 = vmatprep.subr.bf16.mxu0 0
        %559 = vmatpush1.bf16.msra.mxu0 0
        %560 = vmatprep.subr.bf16.mxu0 0
        %561 = vmatpush1.bf16.msra.mxu0 0
        %562 = vmatprep.subr.bf16.mxu0 0
        %563 = vmatpush1.bf16.msra.mxu0 0
        %564 = vmatprep.subr.bf16.mxu0 0
        %565 = vmatpush1.bf16.msra.mxu0 0
        %566 = vmatprep.subr.bf16.mxu0 0
        %567 = vmatpush1.bf16.msra.mxu0 0
        %568 = vmatprep.subr.bf16.mxu0 0
        %569 = vmatpush1.bf16.msra.mxu0 0
        %570 = vmatprep.subr.bf16.mxu0 0
        %571 = vmatpush1.bf16.msra.mxu0 0
        %572 = vmatprep.subr.bf16.mxu0 0
        %573 = vmatpush1.bf16.msra.mxu0 0
        %574 = vmatprep.subr.bf16.mxu0 0
        %575 = vmatpush1.bf16.msra.mxu0 0
        %576 = vmatprep.subr.bf16.mxu0 0
        %577 = vmatpush1.bf16.msra.mxu0 0
        %578 = vmatprep.subr.bf16.mxu0 0
        %579 = vmatpush1.bf16.msra.mxu0 0
        %580 = vmatprep.subr.bf16.mxu0 0
        %581 = vmatpush1.bf16.msra.mxu0 0
        %582 = vmatprep.subr.bf16.mxu0 0
        %583 = vmatpush1.bf16.msra.mxu0 0
        %584 = vmatprep.mubr.bf16.mxu0 0
        %585 = vmatmul.mubr.bf16.gmra.mrb[0].mxu0 %v550
        %v586 = vpop.f32.mrb[0].mxu0
        %v587 = vadd.f32 %v534, %v586
        %v588 = vpop.f32.mrb[0].mxu0
        %v589 = vpop.f32.mrb[0].mxu0
        %v590 = vpop.f32.mrb[0].mxu0
        %591 = vdwg.mxu0
        %v592 = vpack.c.bf16 %v522, %v519
        %v593 = vld [vmem:[%s6] sm:$0xf]
        %v594 = vld [vmem:[%s6 + $0x4] sm:$0xf]
        %v595 = vld [vmem:[%s7] sm:$0x1]
        %v597 = vlaneseq
        %v598 = vshrl.u32 %v597, 7
        %v599 = vsub.s32 0, %v598
        %v600 = vrot.slane %v595, %v599
        %v604 = vunpack.c.l.b16 %v593
        %v605 = vunpack.c.l.b16 %v594
        %v606 = vpack.c.b16 %v605, %v604
        %vm608 = vcmask 130048
        %v610 = vsel %vm608, %v592, 0
        %612 = vmatprep.subr.bf16.mxu0 0
        %613 = vmatpush1.bf16.msra.mxu0 %v606
        %614 = vmatprep.subr.bf16.mxu0 0
        %615 = vmatpush1.bf16.msra.mxu0 0
        %616 = vmatprep.subr.bf16.mxu0 0
        %617 = vmatpush1.bf16.msra.mxu0 0
        %618 = vmatprep.subr.bf16.mxu0 0
        %619 = vmatpush1.bf16.msra.mxu0 0
        %620 = vmatprep.subr.bf16.mxu0 0
        %621 = vmatpush1.bf16.msra.mxu0 0
        %622 = vmatprep.subr.bf16.mxu0 0
        %623 = vmatpush1.bf16.msra.mxu0 0
        %624 = vmatprep.subr.bf16.mxu0 0
        %625 = vmatpush1.bf16.msra.mxu0 0
        %626 = vmatprep.subr.bf16.mxu0 0
        %627 = vmatpush1.bf16.msra.mxu0 0
        %628 = vmatprep.subr.bf16.mxu0 0
        %629 = vmatpush1.bf16.msra.mxu0 0
        %630 = vmatprep.subr.bf16.mxu0 0
        %631 = vmatpush1.bf16.msra.mxu0 0
        %632 = vmatprep.subr.bf16.mxu0 0
        %633 = vmatpush1.bf16.msra.mxu0 0
        %634 = vmatprep.subr.bf16.mxu0 0
        %635 = vmatpush1.bf16.msra.mxu0 0
        %636 = vmatprep.subr.bf16.mxu0 0
        %637 = vmatpush1.bf16.msra.mxu0 0
        %638 = vmatprep.subr.bf16.mxu0 0
        %639 = vmatpush1.bf16.msra.mxu0 0
        %640 = vmatprep.subr.bf16.mxu0 0
        %641 = vmatpush1.bf16.msra.mxu0 0
        %642 = vmatprep.subr.bf16.mxu0 0
        %643 = vmatpush1.bf16.msra.mxu0 0
        %644 = vmatprep.mubr.bf16.mxu0 0
        %645 = vmatmul.mubr.bf16.gmra.mrb[0].mxu0 %v610
        %v646 = vpop.f32.mrb[0].mxu0
        %v647 = vadd.f32 %v600, %v646
        %v648 = vpop.f32.mrb[0].mxu0
        %v649 = vpop.f32.mrb[0].mxu0
        %v650 = vadd.f32 %v600, %v649
        %v651 = vpop.f32.mrb[0].mxu0
        %652 = vdwg.mxu0
        %v653 = vpack.c.bf16 %v587, %v587
        %v654 = vpack.c.bf16 %v650, %v647
        %656 = vrot.lane.b32.xlu0 %v653, 120
        %v657 = vpop.permute.xlu0 %656
        %658 = vrot.lane.b32.xlu0 %v653, 112
        %v659 = vpop.permute.xlu0 %658
        %660 = vrot.lane.b32.xlu0 %v653, 104
        %v661 = vpop.permute.xlu0 %660
        %663 = vrot.lane.b32.xlu0 %v654, 120
        %v664 = vpop.permute.xlu0 %663
        %665 = vrot.lane.b32.xlu0 %v654, 112
        %v666 = vpop.permute.xlu0 %665
        %667 = vrot.lane.b32.xlu0 %v654, 104
        %v668 = vpop.permute.xlu0 %667
        %vm669 = vcmask 64512
        %v671 = vsel %vm669, %v653, 0
        %v674 = vsel %vm669, %v654, 0
        %676 = vmatprep.subr.bf16.mxu0 0
        %677 = vmatpush1.bf16.xpose.msra.mxu0 %v674
        %678 = vmatprep.subr.bf16.mxu0 0
        %679 = vmatpush1.bf16.xpose.msra.mxu0 0
        %680 = vmatprep.subr.bf16.mxu0 0
        %681 = vmatpush1.bf16.xpose.msra.mxu0 0
        %682 = vmatprep.subr.bf16.mxu0 0
        %683 = vmatpush1.bf16.xpose.msra.mxu0 0
        %684 = vmatprep.subr.bf16.mxu0 0
        %685 = vmatpush1.bf16.xpose.msra.mxu0 0
        %686 = vmatprep.subr.bf16.mxu0 0
        %687 = vmatpush1.bf16.xpose.msra.mxu0 0
        %688 = vmatprep.subr.bf16.mxu0 0
        %689 = vmatpush1.bf16.xpose.msra.mxu0 0
        %690 = vmatprep.subr.bf16.mxu0 0
        %691 = vmatpush1.bf16.xpose.msra.mxu0 0
        %692 = vmatprep.subr.bf16.mxu0 0
        %693 = vmatpush1.bf16.xpose.msra.mxu0 0
        %694 = vmatprep.subr.bf16.mxu0 0
        %695 = vmatpush1.bf16.xpose.msra.mxu0 0
        %696 = vmatprep.subr.bf16.mxu0 0
        %697 = vmatpush1.bf16.xpose.msra.mxu0 0
        %698 = vmatprep.subr.bf16.mxu0 0
        %699 = vmatpush1.bf16.xpose.msra.mxu0 0
        %700 = vmatprep.subr.bf16.mxu0 0
        %701 = vmatpush1.bf16.xpose.msra.mxu0 0
        %702 = vmatprep.subr.bf16.mxu0 0
        %703 = vmatpush1.bf16.xpose.msra.mxu0 0
        %704 = vmatprep.subr.bf16.mxu0 0
        %705 = vmatpush1.bf16.xpose.msra.mxu0 0
        %706 = vmatprep.subr.bf16.mxu0 0
        %707 = vmatpush1.bf16.xpose.msra.mxu0 0
        %708 = vmatprep.mubr.bf16.mxu0 0
        %709 = vmatmul.mubr.bf16.gmra.mrb[0].mxu0 %v671
        %v710 = vpop.f32.mrb[0].mxu0
        %v711 = vadd.f32 0.0, %v710
        %v712 = vpop.f32.mrb[0].mxu0
        %v713 = vpop.f32.mrb[0].mxu0
        %v714 = vpop.f32.mrb[0].mxu0
        %715 = vdwg.mxu0
        %v717 = vsel %vm669, %v657, 0
        %v720 = vsel %vm669, %v664, 0
        %722 = vmatprep.subr.bf16.mxu0 0
        %723 = vmatpush1.bf16.xpose.msra.mxu0 %v720
        %724 = vmatprep.subr.bf16.mxu0 0
        %725 = vmatpush1.bf16.xpose.msra.mxu0 0
        %726 = vmatprep.subr.bf16.mxu0 0
        %727 = vmatpush1.bf16.xpose.msra.mxu0 0
        %728 = vmatprep.subr.bf16.mxu0 0
        %729 = vmatpush1.bf16.xpose.msra.mxu0 0
        %730 = vmatprep.subr.bf16.mxu0 0
        %731 = vmatpush1.bf16.xpose.msra.mxu0 0
        %732 = vmatprep.subr.bf16.mxu0 0
        %733 = vmatpush1.bf16.xpose.msra.mxu0 0
        %734 = vmatprep.subr.bf16.mxu0 0
        %735 = vmatpush1.bf16.xpose.msra.mxu0 0
        %736 = vmatprep.subr.bf16.mxu0 0
        %737 = vmatpush1.bf16.xpose.msra.mxu0 0
        %738 = vmatprep.subr.bf16.mxu0 0
        %739 = vmatpush1.bf16.xpose.msra.mxu0 0
        %740 = vmatprep.subr.bf16.mxu0 0
        %741 = vmatpush1.bf16.xpose.msra.mxu0 0
        %742 = vmatprep.subr.bf16.mxu0 0
        %743 = vmatpush1.bf16.xpose.msra.mxu0 0
        %744 = vmatprep.subr.bf16.mxu0 0
        %745 = vmatpush1.bf16.xpose.msra.mxu0 0
        %746 = vmatprep.subr.bf16.mxu0 0
        %747 = vmatpush1.bf16.xpose.msra.mxu0 0
        %748 = vmatprep.subr.bf16.mxu0 0
        %749 = vmatpush1.bf16.xpose.msra.mxu0 0
        %750 = vmatprep.subr.bf16.mxu0 0
        %751 = vmatpush1.bf16.xpose.msra.mxu0 0
        %752 = vmatprep.subr.bf16.mxu0 0
        %753 = vmatpush1.bf16.xpose.msra.mxu0 0
        %754 = vmatprep.mubr.bf16.mxu0 0
        %755 = vmatmul.mubr.bf16.gmra.mrb[0].mxu0 %v717
        %v756 = vpop.f32.mrb[0].mxu0
        %v757 = vadd.f32 0.0, %v756
        %v758 = vpop.f32.mrb[0].mxu0
        %v759 = vpop.f32.mrb[0].mxu0
        %v760 = vpop.f32.mrb[0].mxu0
        %761 = vdwg.mxu0
        %v763 = vsel %vm669, %v659, 0
        %v766 = vsel %vm669, %v666, 0
        %768 = vmatprep.subr.bf16.mxu0 0
        %769 = vmatpush1.bf16.xpose.msra.mxu0 %v766
        %770 = vmatprep.subr.bf16.mxu0 0
        %771 = vmatpush1.bf16.xpose.msra.mxu0 0
        %772 = vmatprep.subr.bf16.mxu0 0
        %773 = vmatpush1.bf16.xpose.msra.mxu0 0
        %774 = vmatprep.subr.bf16.mxu0 0
        %775 = vmatpush1.bf16.xpose.msra.mxu0 0
        %776 = vmatprep.subr.bf16.mxu0 0
        %777 = vmatpush1.bf16.xpose.msra.mxu0 0
        %778 = vmatprep.subr.bf16.mxu0 0
        %779 = vmatpush1.bf16.xpose.msra.mxu0 0
        %780 = vmatprep.subr.bf16.mxu0 0
        %781 = vmatpush1.bf16.xpose.msra.mxu0 0
        %782 = vmatprep.subr.bf16.mxu0 0
        %783 = vmatpush1.bf16.xpose.msra.mxu0 0
        %784 = vmatprep.subr.bf16.mxu0 0
        %785 = vmatpush1.bf16.xpose.msra.mxu0 0
        %786 = vmatprep.subr.bf16.mxu0 0
        %787 = vmatpush1.bf16.xpose.msra.mxu0 0
        %788 = vmatprep.subr.bf16.mxu0 0
        %789 = vmatpush1.bf16.xpose.msra.mxu0 0
        %790 = vmatprep.subr.bf16.mxu0 0
        %791 = vmatpush1.bf16.xpose.msra.mxu0 0
        %792 = vmatprep.subr.bf16.mxu0 0
        %793 = vmatpush1.bf16.xpose.msra.mxu0 0
        %794 = vmatprep.subr.bf16.mxu0 0
        %795 = vmatpush1.bf16.xpose.msra.mxu0 0
        %796 = vmatprep.subr.bf16.mxu0 0
        %797 = vmatpush1.bf16.xpose.msra.mxu0 0
        %798 = vmatprep.subr.bf16.mxu0 0
        %799 = vmatpush1.bf16.xpose.msra.mxu0 0
        %800 = vmatprep.mubr.bf16.mxu0 0
        %801 = vmatmul.mubr.bf16.gmra.mrb[0].mxu0 %v763
        %v802 = vpop.f32.mrb[0].mxu0
        %v803 = vadd.f32 0.0, %v802
        %v804 = vpop.f32.mrb[0].mxu0
        %v805 = vpop.f32.mrb[0].mxu0
        %v806 = vpop.f32.mrb[0].mxu0
        %807 = vdwg.mxu0
        %v809 = vsel %vm669, %v661, 0
        %v812 = vsel %vm669, %v668, 0
        %814 = vmatprep.subr.bf16.mxu0 0
        %815 = vmatpush1.bf16.xpose.msra.mxu0 %v812
        %816 = vmatprep.subr.bf16.mxu0 0
        %817 = vmatpush1.bf16.xpose.msra.mxu0 0
        %818 = vmatprep.subr.bf16.mxu0 0
        %819 = vmatpush1.bf16.xpose.msra.mxu0 0
        %820 = vmatprep.subr.bf16.mxu0 0
        %821 = vmatpush1.bf16.xpose.msra.mxu0 0
        %822 = vmatprep.subr.bf16.mxu0 0
        %823 = vmatpush1.bf16.xpose.msra.mxu0 0
        %824 = vmatprep.subr.bf16.mxu0 0
        %825 = vmatpush1.bf16.xpose.msra.mxu0 0
        %826 = vmatprep.subr.bf16.mxu0 0
        %827 = vmatpush1.bf16.xpose.msra.mxu0 0
        %828 = vmatprep.subr.bf16.mxu0 0
        %829 = vmatpush1.bf16.xpose.msra.mxu0 0
        %830 = vmatprep.subr.bf16.mxu0 0
        %831 = vmatpush1.bf16.xpose.msra.mxu0 0
        %832 = vmatprep.subr.bf16.mxu0 0
        %833 = vmatpush1.bf16.xpose.msra.mxu0 0
        %834 = vmatprep.subr.bf16.mxu0 0
        %835 = vmatpush1.bf16.xpose.msra.mxu0 0
        %836 = vmatprep.subr.bf16.mxu0 0
        %837 = vmatpush1.bf16.xpose.msra.mxu0 0
        %838 = vmatprep.subr.bf16.mxu0 0
        %839 = vmatpush1.bf16.xpose.msra.mxu0 0
        %840 = vmatprep.subr.bf16.mxu0 0
        %841 = vmatpush1.bf16.xpose.msra.mxu0 0
        %842 = vmatprep.subr.bf16.mxu0 0
        %843 = vmatpush1.bf16.xpose.msra.mxu0 0
        %844 = vmatprep.subr.bf16.mxu0 0
        %845 = vmatpush1.bf16.xpose.msra.mxu0 0
        %846 = vmatprep.mubr.bf16.mxu0 0
        %847 = vmatmul.mubr.bf16.gmra.mrb[0].mxu0 %v809
        %v848 = vpop.f32.mrb[0].mxu0
        %v849 = vadd.f32 0.0, %v848
        %v850 = vpop.f32.mrb[0].mxu0
        %v851 = vpop.f32.mrb[0].mxu0
        %v852 = vpop.f32.mrb[0].mxu0
        %853 = vdwg.mxu0
        %v854 = vsel %vm608, %v711, -inf
        %855 = vmax.xlane.f32.xlu0 %v854
        %v856 = vpop.xlane.xlu0 %855
        %v857 = vsel %vm608, %v757, -inf
        %858 = vmax.xlane.f32.xlu0 %v857
        %v859 = vpop.xlane.xlu0 %858
        %v860 = vsel %vm608, %v803, -inf
        %861 = vmax.xlane.f32.xlu0 %v860
        %v862 = vpop.xlane.xlu0 %861
        %v863 = vsel %vm608, %v849, -inf
        %864 = vmax.xlane.f32.xlu0 %v863
        %v865 = vpop.xlane.xlu0 %864
        %v866 = vsub.f32 %v711, %v856
        %v867 = vsub.f32 %v757, %v859
        %v868 = vsub.f32 %v803, %v862
        %v869 = vsub.f32 %v849, %v865
        %v870 = vmul.f32 %v866, 1.442695
        %v871 = vpow.pop %v870
        %v872 = vmul.f32 %v867, 1.442695
        %v873 = vpow.pop %v872
        %v874 = vmul.f32 %v868, 1.442695
        %v875 = vpow.pop %v874
        %v876 = vmul.f32 %v869, 1.442695
        %v877 = vpow.pop %v876
        %v878 = vsel %vm608, %v871, 0.0
        %879 = vadd.xlane.f32.xlu0 %v878
        %v880 = vpop.xlane.xlu0 %879
        %v881 = vsel %vm608, %v873, 0.0
        %882 = vadd.xlane.f32.xlu0 %v881
        %v883 = vpop.xlane.xlu0 %882
        %v884 = vsel %vm608, %v875, 0.0
        %885 = vadd.xlane.f32.xlu0 %v884
        %v886 = vpop.xlane.xlu0 %885
        %v887 = vsel %vm608, %v877, 0.0
        %888 = vadd.xlane.f32.xlu0 %v887
        %v889 = vpop.xlane.xlu0 %888
        %v890 = vrcp.pop %v880
        %v891 = vrcp.pop %v883
        %v892 = vrcp.pop %v886
        %v893 = vrcp.pop %v889
        %v894 = vmul.f32 %v871, %v890
        %v895 = vmul.f32 %v873, %v891
        %v896 = vmul.f32 %v875, %v892
        %v897 = vmul.f32 %v877, %v893
        %898 = vst.msk [vmem:[%s442] sm:$0xff] %vm608, %v894
        %899 = vst.msk [vmem:[%s442 + $0x8] sm:$0xff] %vm608, %v895
        %900 = vst.msk [vmem:[%s442 + $0x10] sm:$0xff] %vm608, %v896
        %901 = vst.msk [vmem:[%s442 + $0x18] sm:$0xff] %vm608, %v897
        %v902 = vpack.c.bf16 %v894, %v894
        %v903 = vpack.c.bf16 %v895, %v895
        %v904 = vpack.c.bf16 %v896, %v896
        %v905 = vpack.c.bf16 %v897, %v897
        %906 = vrot.lane.b32.xlu0 %v654, 96
        %v907 = vpop.permute.xlu0 %906
        %v910 = vsel %vm608, %v902, 0
        %912 = vmatprep.subr.bf16.mxu0 0
        %913 = vmatpush1.bf16.msra.mxu0 %v907
        %914 = vmatprep.subr.bf16.mxu0 0
        %915 = vmatpush1.bf16.msra.mxu0 0
        %916 = vmatprep.subr.bf16.mxu0 0
        %917 = vmatpush1.bf16.msra.mxu0 0
        %918 = vmatprep.subr.bf16.mxu0 0
        %919 = vmatpush1.bf16.msra.mxu0 0
        %920 = vmatprep.subr.bf16.mxu0 0
        %921 = vmatpush1.bf16.msra.mxu0 0
        %922 = vmatprep.subr.bf16.mxu0 0
        %923 = vmatpush1.bf16.msra.mxu0 0
        %924 = vmatprep.subr.bf16.mxu0 0
        %925 = vmatpush1.bf16.msra.mxu0 0
        %926 = vmatprep.subr.bf16.mxu0 0
        %927 = vmatpush1.bf16.msra.mxu0 0
        %928 = vmatprep.subr.bf16.mxu0 0
        %929 = vmatpush1.bf16.msra.mxu0 0
        %930 = vmatprep.subr.bf16.mxu0 0
        %931 = vmatpush1.bf16.msra.mxu0 0
        %932 = vmatprep.subr.bf16.mxu0 0
        %933 = vmatpush1.bf16.msra.mxu0 0
        %934 = vmatprep.subr.bf16.mxu0 0
        %935 = vmatpush1.bf16.msra.mxu0 0
        %936 = vmatprep.subr.bf16.mxu0 0
        %937 = vmatpush1.bf16.msra.mxu0 0
        %938 = vmatprep.subr.bf16.mxu0 0
        %939 = vmatpush1.bf16.msra.mxu0 0
        %940 = vmatprep.subr.bf16.mxu0 0
        %941 = vmatpush1.bf16.msra.mxu0 0
        %942 = vmatprep.subr.bf16.mxu0 0
        %943 = vmatpush1.bf16.msra.mxu0 0
        %944 = vmatprep.mubr.bf16.mxu0 0
        %945 = vmatmul.mubr.bf16.gmra.mrb[0].mxu0 %v910
        %v946 = vpop.f32.mrb[0].mxu0
        %v947 = vadd.f32 0.0, %v946
        %v948 = vpop.f32.mrb[0].mxu0
        %v949 = vpop.f32.mrb[0].mxu0
        %v950 = vpop.f32.mrb[0].mxu0
        %951 = vdwg.mxu0
        %952 = vrot.lane.b32.xlu0 %v664, 96
        %v953 = vpop.permute.xlu0 %952
        %v956 = vsel %vm608, %v903, 0
        %958 = vmatprep.subr.bf16.mxu0 0
        %959 = vmatpush1.bf16.msra.mxu0 %v953
        %960 = vmatprep.subr.bf16.mxu0 0
        %961 = vmatpush1.bf16.msra.mxu0 0
        %962 = vmatprep.subr.bf16.mxu0 0
        %963 = vmatpush1.bf16.msra.mxu0 0
        %964 = vmatprep.subr.bf16.mxu0 0
        %965 = vmatpush1.bf16.msra.mxu0 0
        %966 = vmatprep.subr.bf16.mxu0 0
        %967 = vmatpush1.bf16.msra.mxu0 0
        %968 = vmatprep.subr.bf16.mxu0 0
        %969 = vmatpush1.bf16.msra.mxu0 0
        %970 = vmatprep.subr.bf16.mxu0 0
        %971 = vmatpush1.bf16.msra.mxu0 0
        %972 = vmatprep.subr.bf16.mxu0 0
        %973 = vmatpush1.bf16.msra.mxu0 0
        %974 = vmatprep.subr.bf16.mxu0 0
        %975 = vmatpush1.bf16.msra.mxu0 0
        %976 = vmatprep.subr.bf16.mxu0 0
        %977 = vmatpush1.bf16.msra.mxu0 0
        %978 = vmatprep.subr.bf16.mxu0 0
        %979 = vmatpush1.bf16.msra.mxu0 0
        %980 = vmatprep.subr.bf16.mxu0 0
        %981 = vmatpush1.bf16.msra.mxu0 0
        %982 = vmatprep.subr.bf16.mxu0 0
        %983 = vmatpush1.bf16.msra.mxu0 0
        %984 = vmatprep.subr.bf16.mxu0 0
        %985 = vmatpush1.bf16.msra.mxu0 0
        %986 = vmatprep.subr.bf16.mxu0 0
        %987 = vmatpush1.bf16.msra.mxu0 0
        %988 = vmatprep.subr.bf16.mxu0 0
        %989 = vmatpush1.bf16.msra.mxu0 0
        %990 = vmatprep.mubr.bf16.mxu0 0
        %991 = vmatmul.mubr.bf16.gmra.mrb[0].mxu0 %v956
        %v992 = vpop.f32.mrb[0].mxu0
        %v993 = vadd.f32 0.0, %v992
        %v994 = vpop.f32.mrb[0].mxu0
        %v995 = vpop.f32.mrb[0].mxu0
        %v996 = vpop.f32.mrb[0].mxu0
        %997 = vdwg.mxu0
        %998 = vrot.lane.b32.xlu0 %v666, 96
        %v999 = vpop.permute.xlu0 %998
        %v1002 = vsel %vm608, %v904, 0
        %1004 = vmatprep.subr.bf16.mxu0 0
        %1005 = vmatpush1.bf16.msra.mxu0 %v999
        %1006 = vmatprep.subr.bf16.mxu0 0
        %1007 = vmatpush1.bf16.msra.mxu0 0
        %1008 = vmatprep.subr.bf16.mxu0 0
        %1009 = vmatpush1.bf16.msra.mxu0 0
        %1010 = vmatprep.subr.bf16.mxu0 0
        %1011 = vmatpush1.bf16.msra.mxu0 0
        %1012 = vmatprep.subr.bf16.mxu0 0
        %1013 = vmatpush1.bf16.msra.mxu0 0
        %1014 = vmatprep.subr.bf16.mxu0 0
        %1015 = vmatpush1.bf16.msra.mxu0 0
        %1016 = vmatprep.subr.bf16.mxu0 0
        %1017 = vmatpush1.bf16.msra.mxu0 0
        %1018 = vmatprep.subr.bf16.mxu0 0
        %1019 = vmatpush1.bf16.msra.mxu0 0
        %1020 = vmatprep.subr.bf16.mxu0 0
        %1021 = vmatpush1.bf16.msra.mxu0 0
        %1022 = vmatprep.subr.bf16.mxu0 0
        %1023 = vmatpush1.bf16.msra.mxu0 0
        %1024 = vmatprep.subr.bf16.mxu0 0
        %1025 = vmatpush1.bf16.msra.mxu0 0
        %1026 = vmatprep.subr.bf16.mxu0 0
        %1027 = vmatpush1.bf16.msra.mxu0 0
        %1028 = vmatprep.subr.bf16.mxu0 0
        %1029 = vmatpush1.bf16.msra.mxu0 0
        %1030 = vmatprep.subr.bf16.mxu0 0
        %1031 = vmatpush1.bf16.msra.mxu0 0
        %1032 = vmatprep.subr.bf16.mxu0 0
        %1033 = vmatpush1.bf16.msra.mxu0 0
        %1034 = vmatprep.subr.bf16.mxu0 0
        %1035 = vmatpush1.bf16.msra.mxu0 0
        %1036 = vmatprep.mubr.bf16.mxu0 0
        %1037 = vmatmul.mubr.bf16.gmra.mrb[0].mxu0 %v1002
        %v1038 = vpop.f32.mrb[0].mxu0
        %v1039 = vadd.f32 0.0, %v1038
        %v1040 = vpop.f32.mrb[0].mxu0
        %v1041 = vpop.f32.mrb[0].mxu0
        %v1042 = vpop.f32.mrb[0].mxu0
        %1043 = vdwg.mxu0
        %1044 = vrot.lane.b32.xlu0 %v668, 96
        %v1045 = vpop.permute.xlu0 %1044
        %v1048 = vsel %vm608, %v905, 0
        %1050 = vmatprep.subr.bf16.mxu0 0
        %1051 = vmatpush1.bf16.msra.mxu0 %v1045
        %1052 = vmatprep.subr.bf16.mxu0 0
        %1053 = vmatpush1.bf16.msra.mxu0 0
        %1054 = vmatprep.subr.bf16.mxu0 0
        %1055 = vmatpush1.bf16.msra.mxu0 0
        %1056 = vmatprep.subr.bf16.mxu0 0
        %1057 = vmatpush1.bf16.msra.mxu0 0
        %1058 = vmatprep.subr.bf16.mxu0 0
        %1059 = vmatpush1.bf16.msra.mxu0 0
        %1060 = vmatprep.subr.bf16.mxu0 0
        %1061 = vmatpush1.bf16.msra.mxu0 0
        %1062 = vmatprep.subr.bf16.mxu0 0
        %1063 = vmatpush1.bf16.msra.mxu0 0
        %1064 = vmatprep.subr.bf16.mxu0 0
        %1065 = vmatpush1.bf16.msra.mxu0 0
        %1066 = vmatprep.subr.bf16.mxu0 0
        %1067 = vmatpush1.bf16.msra.mxu0 0
        %1068 = vmatprep.subr.bf16.mxu0 0
        %1069 = vmatpush1.bf16.msra.mxu0 0
        %1070 = vmatprep.subr.bf16.mxu0 0
        %1071 = vmatpush1.bf16.msra.mxu0 0
        %1072 = vmatprep.subr.bf16.mxu0 0
        %1073 = vmatpush1.bf16.msra.mxu0 0
        %1074 = vmatprep.subr.bf16.mxu0 0
        %1075 = vmatpush1.bf16.msra.mxu0 0
        %1076 = vmatprep.subr.bf16.mxu0 0
        %1077 = vmatpush1.bf16.msra.mxu0 0
        %1078 = vmatprep.subr.bf16.mxu0 0
        %1079 = vmatpush1.bf16.msra.mxu0 0
        %1080 = vmatprep.subr.bf16.mxu0 0
        %1081 = vmatpush1.bf16.msra.mxu0 0
        %1082 = vmatprep.mubr.bf16.mxu0 0
        %1083 = vmatmul.mubr.bf16.gmra.mrb[0].mxu0 %v1048
        %v1084 = vpop.f32.mrb[0].mxu0
        %v1085 = vadd.f32 0.0, %v1084
        %v1086 = vpop.f32.mrb[0].mxu0
        %v1087 = vpop.f32.mrb[0].mxu0
        %v1088 = vpop.f32.mrb[0].mxu0
        %1089 = vdwg.mxu0
        %v1090 = vpack.c.bf16 %v947, %v947
        %v1091 = vpack.c.bf16 %v993, %v993
        %v1092 = vpack.c.bf16 %v1039, %v1039
        %v1093 = vpack.c.bf16 %v1085, %v1085
        %1095 = vrot.lane.b32.xlu0 %v1091, 8
        %v1096 = vpop.permute.xlu0 %1095
        %1098 = vrot.lane.b32.xlu0 %v1092, 16
        %v1099 = vpop.permute.xlu0 %1098
        %1101 = vrot.lane.b32.xlu0 %v1093, 24
        %v1102 = vpop.permute.xlu0 %1101
        %v1105 = vsel %vm669, %v1090, %v1096
        %v1107 = vsel %vm608, %v1105, %v1099
        %v1109 = vsel %vm476, %v1107, %v1102
        %v1110 = vld [vmem:[%s8] sm:$0xf]
        %v1111 = vld [vmem:[%s8 + $0x4] sm:$0xf]
        %v1112 = vld [vmem:[%s8 + $0x8] sm:$0xf]
        %v1113 = vld [vmem:[%s8 + $0xc] sm:$0xf]
        %v1114 = vld [vmem:[%s9] sm:$0x1]
        %v1116 = vlaneseq
        %v1117 = vshrl.u32 %v1116, 7
        %v1118 = vsub.s32 0, %v1117
        %v1119 = vrot.slane %v1114, %v1118
        %v1125 = vunpack.c.l.b16 %v1110
        %v1126 = vunpack.c.l.b16 %v1111
        %v1127 = vunpack.c.l.b16 %v1112
        %v1128 = vunpack.c.l.b16 %v1113
        %v1129 = vpack.c.b16 %v1126, %v1125
        %v1130 = vpack.c.b16 %v1128, %v1127
        %v1133 = vsel %vm548, %v1109, 0
        %1135 = vmatprep.subr.bf16.mxu0 0
        %1136 = vmatpush1.bf16.msra.mxu0 %v1129
        %1137 = vmatprep.subr.bf16.mxu0 0
        %1138 = vmatpush1.bf16.msra.mxu0 %v1130
        %1139 = vmatprep.subr.bf16.mxu0 0
        %1140 = vmatpush1.bf16.msra.mxu0 0
        %1141 = vmatprep.subr.bf16.mxu0 0
        %1142 = vmatpush1.bf16.msra.mxu0 0
        %1143 = vmatprep.subr.bf16.mxu0 0
        %1144 = vmatpush1.bf16.msra.mxu0 0
        %1145 = vmatprep.subr.bf16.mxu0 0
        %1146 = vmatpush1.bf16.msra.mxu0 0
        %1147 = vmatprep.subr.bf16.mxu0 0
        %1148 = vmatpush1.bf16.msra.mxu0 0
        %1149 = vmatprep.subr.bf16.mxu0 0
        %1150 = vmatpush1.bf16.msra.mxu0 0
        %1151 = vmatprep.subr.bf16.mxu0 0
        %1152 = vmatpush1.bf16.msra.mxu0 0
        %1153 = vmatprep.subr.bf16.mxu0 0
        %1154 = vmatpush1.bf16.msra.mxu0 0
        %1155 = vmatprep.subr.bf16.mxu0 0
        %1156 = vmatpush1.bf16.msra.mxu0 0
        %1157 = vmatprep.subr.bf16.mxu0 0
        %1158 = vmatpush1.bf16.msra.mxu0 0
        %1159 = vmatprep.subr.bf16.mxu0 0
        %1160 = vmatpush1.bf16.msra.mxu0 0
        %1161 = vmatprep.subr.bf16.mxu0 0
        %1162 = vmatpush1.bf16.msra.mxu0 0
        %1163 = vmatprep.subr.bf16.mxu0 0
        %1164 = vmatpush1.bf16.msra.mxu0 0
        %1165 = vmatprep.subr.bf16.mxu0 0
        %1166 = vmatpush1.bf16.msra.mxu0 0
        %1167 = vmatprep.mubr.bf16.mxu0 0
        %1168 = vmatmul.mubr.bf16.gmra.mrb[0].mxu0 %v1133
        %v1169 = vpop.f32.mrb[0].mxu0
        %v1170 = vadd.f32 %v1119, %v1169
        %v1171 = vpop.f32.mrb[0].mxu0
        %v1172 = vpop.f32.mrb[0].mxu0
        %v1173 = vpop.f32.mrb[0].mxu0
        %1174 = vdwg.mxu0
        %1175 = vst.msk [vmem:[%s435] sm:$0xff] %vm548, %v1170
        %s1176 = sand.u32 %s261, 1
        %s1177 = scalar_lea.sflag [#allocation4], %s1176
        %s1178 = sand.u32 %s261, 1
        %s1179 = smul.addr %s1178, 8
        %s1180 = scalar_lea.vmem [#allocation7], %s1179
        %s1181 = sand.u32 %s287, 1
        %s1182 = scalar_lea.sflag [#allocation9], %s1181
        %s1183 = sand.u32 %s287, 1
        %s1184 = smul.addr %s1183, 32
        %s1185 = scalar_lea.vmem [#allocation8], %s1184
        // Predicated region
        $region69: #{tpu_custom_call.1} parent=59 // pred_check
          %p1186 = pneg %p271
        $region70: #{tpu_custom_call.1} parent=59 // pred_check_branch
          %1188 = sbr.rel (%p1186) target = $region72
        $region71: #{tpu_custom_call.1} parent=59 // pred_region
          %s1190 = ssub.s32 128, 128
          %1191 = vsyncadd %s1177, %s1190
          %s1192 = smul.addr %s33, 128
          %s1193 = scalar_lea.hbm %s10, %s1192
          %s1195 = sshll.u32 %s1180, 4
          %s1196 = int_to_ptr.vmem [resolvable:$true] %s1195
          %1198 = dma.vmem_to_hbm [thread:$0]  %s1196, 128, %s1193, %s1177
        $region72: #{tpu_custom_call.1} parent=59 // pred_fallthru
          _
        // Predicated region
        $region73: #{tpu_custom_call.1} parent=59 // pred_check
          %p1199 = pneg %p297
        $region74: #{tpu_custom_call.1} parent=59 // pred_check_branch
          %1201 = sbr.rel (%p1199) target = $region76
        $region75: #{tpu_custom_call.1} parent=59 // pred_region
          %s1203 = ssub.s32 512, 512
          %1204 = vsyncadd %s1182, %s1203
          %s1205 = smul.addr %s33, 4
          %s1206 = smul.addr %s1205, 128
          %s1207 = scalar_lea.hbm %s11, %s1206
          %s1208 = sshll.u32 %s1185, 4
          %s1209 = int_to_ptr.vmem [resolvable:$true] %s1208
          %1214 = dma.vmem_to_hbm [thread:$0]  %s1209, 512, %s1207, %s1182, 128, 128, 8
        $region76: #{tpu_custom_call.1} parent=59 // pred_fallthru
          _
      $region60: #{tpu_custom_call.1} parent=5 // pred_fallthru
        _
      %p1215 = scmp.le.s32.totalorder 2, %s28
      // Predicated region
      $region77: #{tpu_custom_call.1} parent=5 // pred_check
        %p1216 = pneg %p1215
      $region78: #{tpu_custom_call.1} parent=5 // pred_check_branch
        %1218 = sbr.rel (%p1216) target = $region80
      $region79: #{tpu_custom_call.1} parent=5 // pred_region
        %s1219 = ssub.s32 %s28, 2
        // Predicated region
        $region81: #{tpu_custom_call.1} parent=79 // pred_check
          %p1220 = pneg %p277
        $region82: #{tpu_custom_call.1} parent=79 // pred_check_branch
          %1222 = sbr.rel (%p1220) target = $region84
        $region83: #{tpu_custom_call.1} parent=79 // pred_region
          %s1223 = sand.u32 %s262, 1
          %s1224 = scalar_lea.sflag [#allocation4], %s1223
          %s1225 = sand.u32 %s262, 1
          %s1226 = smul.addr %s1225, 8
          %s1227 = scalar_lea.vmem [#allocation7], %s1226
          %1228 = dma.done %s1224, 128
        $region84: #{tpu_custom_call.1} parent=79 // pred_fallthru
          _
        // Predicated region
        $region85: #{tpu_custom_call.1} parent=79 // pred_check
          %p1229 = pneg %p303
        $region86: #{tpu_custom_call.1} parent=79 // pred_check_branch
          %1231 = sbr.rel (%p1229) target = $region88
        $region87: #{tpu_custom_call.1} parent=79 // pred_region
          %s1232 = sand.u32 %s288, 1
          %s1233 = scalar_lea.sflag [#allocation9], %s1232
          %s1234 = sand.u32 %s288, 1
          %s1235 = smul.addr %s1234, 32
          %s1236 = scalar_lea.vmem [#allocation8], %s1235
          %1237 = dma.done %s1233, 512
        $region88: #{tpu_custom_call.1} parent=79 // pred_fallthru
          _
      $region80: #{tpu_custom_call.1} parent=5 // pred_fallthru
        _
    $region6: #{tpu_custom_call.1} parent=1 // loop_footer
      %s32 = sadd.s32 1, %s28
    $region7: #{tpu_custom_call.1} parent=1 // loop_footer_branch
      %27 = sbr.rel target = $region3
    $region8: #{tpu_custom_call.1} parent=1 // loop_exit
      _
    %1238 = vsyncpa [#allocation3], 1
    %s1239 = scalar_lea.sflag [#allocation3], 1
    %1240 = vsyncpa %s1239, 1
    %1241 = vsyncpa [#allocation6], 1
    %1242 = vsyncpa [#allocation4], 1
    %s1243 = scalar_lea.sflag [#allocation4], 1
    %1244 = vsyncpa %s1243, 1
    %1245 = vsyncpa [#allocation9], 1
    %s1246 = scalar_lea.sflag [#allocation9], 1
    %1247 = vsyncpa %s1246, 1

</llo_original>
